<compile_context>
chip_gen: v7x
topology: tpu7x:2x2x1
jax: 0.10.0
libtpu: 0.0.40
codegen_flags: <defaults>
</compile_context>

<pallas_src>
import jax
import jax.numpy as jnp
from jax.experimental import pallas as pl
from jax.experimental.pallas import tpu as pltpu

BN_EPS = 1e-5


def _round_up(x, m):
    return ((x + m - 1) // m) * m


def _pad2(a, rows, cols):
    r, c = a.shape
    return jnp.pad(a, ((0, rows - r), (0, cols - c)))


def _vmem_limit_bytes(*block_bytes):
    """Rough per-call VMEM estimate (2x for double-buffering + headroom).

    Returns None (keep the default scoped limit) when the default is enough.
    """
    est = 2 * int(sum(block_bytes)) + (4 << 20)
    if est <= (32 << 20):
        return None
    return int(min(est, 128 << 20))


# ---------------------------------------------------------------------------
# Kernel 1 (tiled path, input x only): per-feature sum / sum-of-squares,
# accumulated over the row grid into a resident (8, D) output:
#   row 0 = sum, row 1 = sum of squares.
# ---------------------------------------------------------------------------
def bn_stats_kernel(x_ref, stats_ref):
    @pl.when(pl.program_id(0) == 0)
    def _():
        stats_ref[...] = jnp.zeros_like(stats_ref)

    x = x_ref[...].astype(jnp.float32)
    stats_ref[0:1, :] += jnp.sum(x, axis=0, keepdims=True)
    stats_ref[1:2, :] += jnp.sum(x * x, axis=0, keepdims=True)


def _bn_stats(h, tile_n):
    n_pad, d = h.shape
    limit = _vmem_limit_bytes(tile_n * d * h.dtype.itemsize, 8 * d * 4)
    return pl.pallas_call(
        bn_stats_kernel,
        out_shape=jax.ShapeDtypeStruct((8, d), jnp.float32),
        grid_spec=pltpu.PrefetchScalarGridSpec(
            num_scalar_prefetch=0,
            grid=(n_pad // tile_n,),
            in_specs=[pl.BlockSpec((tile_n, d), lambda i: (i, 0))],
            out_specs=pl.BlockSpec((8, d), lambda i: (0, 0)),
        ),
        compiler_params=pltpu.CompilerParams(
            dimension_semantics=("arbitrary",), vmem_limit_bytes=limit),
    )(h)


# ---------------------------------------------------------------------------
# Kernel 2 (tiled path): fused  y = relu(x @ W' + b')  with BN already folded into
# (W', b') in the wrapper.  Padded rows are masked to zero before the single store,
# and the kernel also accumulates sum / sum-of-squares of its f32 output so the next
# layer's BN statistics need no extra HBM pass.
# ---------------------------------------------------------------------------
def lin_relu_stats_kernel(nreal_ref, x_ref, w_ref, b_ref, o_ref, stats_ref):
    pid = pl.program_id(0)          # read OUTSIDE any pl.when body (compile fix)

    @pl.when(pid == 0)
    def _():
        stats_ref[...] = jnp.zeros_like(stats_ref)

    tile_n = x_ref.shape[0]
    y = jnp.dot(x_ref[...].astype(w_ref.dtype), w_ref[...],
                preferred_element_type=jnp.float32) + b_ref[...]
    y = jnp.maximum(y, 0.0)

    # Unconditional padded-row mask folded into the single store: no second store,
    # and padded rows never pollute the fused next-layer statistics.
    row = pid * tile_n + jax.lax.broadcasted_iota(jnp.int32, (tile_n, 1), 0)
    y = jnp.where(row < nreal_ref[0], y, 0.0)

    o_ref[...] = y.astype(o_ref.dtype)
    stats_ref[0:1, :] += jnp.sum(y, axis=0, keepdims=True)
    stats_ref[1:2, :] += jnp.sum(y * y, axis=0, keepdims=True)


def _lin_relu_stats(h, w, b, n_real_arr, tile_n, out_dtype):
    n_pad, d_in = h.shape
    d_out = w.shape[1]
    limit = _vmem_limit_bytes(
        tile_n * d_in * h.dtype.itemsize,
        d_in * d_out * w.dtype.itemsize,
        d_out * 4,
        tile_n * d_out * jnp.dtype(out_dtype).itemsize,
        8 * d_out * 4)
    return pl.pallas_call(
        lin_relu_stats_kernel,
        out_shape=(jax.ShapeDtypeStruct((n_pad, d_out), out_dtype),
                   jax.ShapeDtypeStruct((8, d_out), jnp.float32)),
        grid_spec=pltpu.PrefetchScalarGridSpec(
            num_scalar_prefetch=1,                       # n_real lands in SMEM
            grid=(n_pad // tile_n,),
            in_specs=[
                pl.BlockSpec((tile_n, d_in), lambda i, n: (i, 0)),
                pl.BlockSpec((d_in, d_out), lambda i, n: (0, 0)),
                pl.BlockSpec((1, d_out), lambda i, n: (0, 0)),
            ],
            out_specs=(pl.BlockSpec((tile_n, d_out), lambda i, n: (i, 0)),
                       pl.BlockSpec((8, d_out), lambda i, n: (0, 0))),
        ),
        # The row axis carries the resident stats accumulator -> must be "arbitrary".
        compiler_params=pltpu.CompilerParams(
            dimension_semantics=("arbitrary",), vmem_limit_bytes=limit),
    )(n_real_arr, h, w, b)


# ---------------------------------------------------------------------------
# Kernel 3 (small-N fast path): the whole 3-layer forward in one pallas_call with
# every intermediate held in VMEM (stats computed in-kernel between phases).
# ---------------------------------------------------------------------------
def net_fused_small_kernel(nreal_ref, x_ref,
                           g1_ref, be1_ref, w1_ref, b1_ref,
                           g2_ref, be2_ref, w2_ref, b2_ref,
                           g3_ref, be3_ref, w3_ref, b3_ref, o_ref):
    n_pad = x_ref.shape[0]
    n_real = nreal_ref[0]
    inv_n = 1.0 / n_real.astype(jnp.float32)
    row = jax.lax.broadcasted_iota(jnp.int32, (n_pad, 1), 0)
    row_ok = row < n_real            # padded rows masked to zero after every layer

    def bn_lin_relu(h, g, be, w_ref, b_ref):
        s = jnp.sum(h, axis=0, keepdims=True)
        sq = jnp.sum(h * h, axis=0, keepdims=True)
        mu = s * inv_n
        var = jnp.maximum(sq * inv_n - mu * mu, 0.0)   # biased variance (training mode)
        scale = jax.lax.rsqrt(var + BN_EPS) * g
        shift = be - mu * scale
        hn = h * scale + shift
        y = jnp.dot(hn.astype(w_ref.dtype), w_ref[...],
                    preferred_element_type=jnp.float32) + b_ref[...]
        return jnp.where(row_ok, jnp.maximum(y, 0.0), 0.0)

    h = x_ref[...]
    h = bn_lin_relu(h, g1_ref[...], be1_ref[...], w1_ref, b1_ref)
    h = bn_lin_relu(h, g2_ref[...], be2_ref[...], w2_ref, b2_ref)
    h = bn_lin_relu(h, g3_ref[...], be3_ref[...], w3_ref, b3_ref)
    o_ref[...] = h


def _forward_fused_small(xp, n_real_arr, g1, be1, w1, b1, g2, be2, w2, b2,
                         g3, be3, w3, b3):
    n_pad, _ = xp.shape
    d3 = w3.shape[1]
    ins = (xp, g1, be1, w1, b1, g2, be2, w2, b2, g3, be3, w3, b3)

    def full(a):
        return pl.BlockSpec(a.shape, lambda i, nref: (0, 0))

    return pl.pallas_call(
        net_fused_small_kernel,
        out_shape=jax.ShapeDtypeStruct((n_pad, d3), jnp.float32),
        grid_spec=pltpu.PrefetchScalarGridSpec(
            num_scalar_prefetch=1,
            grid=(1,),
            in_specs=[full(a) for a in ins],
            out_specs=pl.BlockSpec((n_pad, d3), lambda i, nref: (0, 0)),
        ),
        compiler_params=pltpu.CompilerParams(dimension_semantics=("arbitrary",)),
    )(n_real_arr, *ins)


# ---------------------------------------------------------------------------
# Wrapper-side BN folding (tiny (1,d) / (d_in,d_out) ops).
# ---------------------------------------------------------------------------
def _bn_scale_shift(stats, n_real_f, gamma, beta):
    s, sq = stats[0:1, :], stats[1:2, :]
    mu = s / n_real_f
    var = jnp.maximum(sq / n_real_f - mu * mu, 0.0)      # biased variance (torch training)
    scale = jax.lax.rsqrt(var + BN_EPS) * gamma
    shift = beta - mu * scale
    return scale, shift


# ---------------------------------------------------------------------------
# Full forward pass.
# ---------------------------------------------------------------------------
def net_forward(x, params, tile_n=512, matmul_dtype=jnp.bfloat16, force_tiled=False):
    n, d = x.shape
    d0 = _round_up(d, 128)          # padded input features
    d1, d2, d3 = 256, 128, 128      # lin1 / lin2(64->128) / lin3(2->128) padded widths
    act_dtype = jnp.bfloat16 if matmul_dtype == jnp.bfloat16 else jnp.float32
    mm_bytes = jnp.dtype(matmul_dtype).itemsize

    n_real_arr = jnp.array([n], jnp.int32)
    n_real_f = jnp.float32(n)

    # Zero-padded parameters (zero-padded gamma/weights keep padded lanes exactly zero).
    g1 = _pad2(params["g1"], 1, d0); be1 = _pad2(params["be1"], 1, d0)
    w1 = _pad2(params["w1"], d0, d1); b1 = _pad2(params["b1"], 1, d1)
    g2 = _pad2(params["g2"], 1, d1); be2 = _pad2(params["be2"], 1, d1)
    w2 = _pad2(params["w2"], d1, d2); b2 = _pad2(params["b2"], 1, d2)
    g3 = _pad2(params["g3"], 1, d2); be3 = _pad2(params["be3"], 1, d2)
    w3 = _pad2(params["w3"], d2, d3); b3 = _pad2(params["b3"], 1, d3)

    # ---- small-N fast path: everything resident in VMEM, one pallas_call --------------
    n_pad_fast = _round_up(n, 8)
    act_bytes = n_pad_fast * (d0 + d1 + d2 + d3) * 4
    wgt_bytes = (d0 * d1 + d1 * d2 + d2 * d3) * mm_bytes
    fast_fits = 2 * (act_bytes + wgt_bytes) + (2 << 20) <= (12 << 20)  # safe on v5e/v6e/v7x
    if fast_fits and not force_tiled:
        xp = _pad2(x.astype(jnp.float32), n_pad_fast, d0)
        out = _forward_fused_small(
            xp, n_real_arr,
            g1, be1, w1.astype(matmul_dtype), b1,
            g2, be2, w2.astype(matmul_dtype), b2,
            g3, be3, w3.astype(matmul_dtype), b3)
        return out[:n, :2]

    # ---- tiled path --------------------------------------------------------------------
    tile_n = max(128, (int(tile_n) // 128) * 128)        # multiple of 128: f32/bf16 safe
    tile_n = min(tile_n, _round_up(n, 128))              # keep n_pad tight
    n_pad = _round_up(n, tile_n)
    xp = _pad2(x.astype(jnp.float32), n_pad, d0)

    # Stand-alone stats pass only for the raw input; every later layer's stats come
    # fused out of the producing matmul pass.
    stats = _bn_stats(xp, tile_n)

    h = xp
    layers = ((g1, be1, w1, b1, act_dtype),
              (g2, be2, w2, b2, act_dtype),
              (g3, be3, w3, b3, jnp.float32))
    for g, be, w, b, out_dtype in layers:
        scale, shift = _bn_scale_shift(stats, n_real_f, g, be)
        w_fold = (w * scale.reshape(-1, 1)).astype(matmul_dtype)  # BN folded into weights
        b_fold = shift @ w + b                                     # (1, d_out), f32
        h, stats = _lin_relu_stats(h, w_fold, b_fold, n_real_arr, tile_n, out_dtype)

    return h[:n, :2]


# ---------------------------------------------------------------------------
# Parameter init (mimics torch.nn.Linear.reset_parameters: U(-1/sqrt(fan_in), +)),
# BatchNorm affine defaults gamma=1, beta=0. Weights stored pre-transposed [in, out].
# ---------------------------------------------------------------------------
def init_params(key, in_features):
    dims = [(in_features, 256), (256, 64), (64, 2)]
    params = {}
    for idx, (fan_in, fan_out) in enumerate(dims, start=1):
        key, kw, kb = jax.random.split(key, 3)
        bound = 1.0 / jnp.sqrt(jnp.float32(fan_in))
        params[f"w{idx}"] = jax.random.uniform(kw, (fan_in, fan_out), jnp.float32, -bound, bound)
        params[f"b{idx}"] = jax.random.uniform(kb, (1, fan_out), jnp.float32, -bound, bound)
    params["g1"] = jnp.ones((1, in_features), jnp.float32)
    params["be1"] = jnp.zeros((1, in_features), jnp.float32)
    params["g2"] = jnp.ones((1, 256), jnp.float32)
    params["be2"] = jnp.zeros((1, 256), jnp.float32)
    params["g3"] = jnp.ones((1, 64), jnp.float32)
    params["be3"] = jnp.zeros((1, 64), jnp.float32)
    return params


# ---------------------------------------------------------------------------
# Pure-JAX reference (torch semantics; matmul dtype selectable).
# ---------------------------------------------------------------------------
def net_reference(x, params, matmul_dtype=jnp.float32):
    def bn(h, g, b):
        mu = jnp.mean(h, axis=0, keepdims=True)
        var = jnp.maximum(jnp.mean(h * h, axis=0, keepdims=True) - mu * mu, 0.0)
        scale = jax.lax.rsqrt(var + BN_EPS) * g
        return h * scale + (b - mu * scale)

    def lin_relu(h, w, b):
        y = jnp.dot(h.astype(matmul_dtype), w.astype(matmul_dtype),
                    preferred_element_type=jnp.float32) + b
        return jnp.maximum(y, 0.0)

    h = bn(x, params["g1"], params["be1"]); h = lin_relu(h, params["w1"], params["b1"])
    h = bn(h, params["g2"], params["be2"]); h = lin_relu(h, params["w2"], params["b2"])
    h = bn(h, params["g3"], params["be3"]); h = lin_relu(h, params["w3"], params["b3"])
    return h


if __name__ == "__main__":
    # Small synthetic node batch: 217 rows (not a tile multiple -> exercises row masking),
    # 51 input features (not a lane multiple -> exercises feature padding).
    N, D = 217, 51
    key = jax.random.PRNGKey(0)
    kx, kp = jax.random.split(key)
    x = jax.random.normal(kx, (N, D), jnp.float32)
    params = init_params(kp, D)

    # 1) Auto path -> small-N fully-fused single pallas_call.
    out_fast = jax.block_until_ready(net_forward(x, params))
    # 2) Tiled path (input-stats pass + 3 fused matmul+relu+stats passes), bf16 activations.
    out_tiled = jax.block_until_ready(
        net_forward(x, params, tile_n=128, force_tiled=True))
    # 3) Tiled path in pure f32 (tight structural check without bf16 noise).
    out_tiled_f32 = jax.block_until_ready(
        net_forward(x, params, tile_n=128, force_tiled=True, matmul_dtype=jnp.float32))

    assert out_fast.shape == (N, 2)
    assert out_tiled.shape == (N, 2)

    ref_f32 = net_reference(x, params, matmul_dtype=jnp.float32)
    ref_bf16 = net_reference(x, params, matmul_dtype=jnp.bfloat16)

    assert jnp.allclose(out_fast, ref_bf16, atol=2e-2, rtol=2e-2)
    assert jnp.allclose(out_tiled_f32, ref_f32, atol=2e-2, rtol=2e-2)
    assert jnp.allclose(out_fast, ref_f32, atol=1e-1, rtol=1e-1)
    assert jnp.allclose(out_tiled, ref_f32, atol=1e-1, rtol=1e-1)
    print("KERNEL_OK")
</pallas_src>

<mosaic_0001>
module attributes {stable_mosaic.version = 11 : i64} {
  func.func @net_fused_small_kernel(%arg0: i32, %arg1: memref<1xi32, #tpu.memory_space<smem>>, %arg2: memref<224x128xf32, #tpu.memory_space<vmem>>, %arg3: memref<1x128xf32, #tpu.memory_space<vmem>>, %arg4: memref<1x128xf32, #tpu.memory_space<vmem>>, %arg5: memref<128x256xbf16, #tpu.memory_space<vmem>>, %arg6: memref<1x256xf32, #tpu.memory_space<vmem>>, %arg7: memref<1x256xf32, #tpu.memory_space<vmem>>, %arg8: memref<1x256xf32, #tpu.memory_space<vmem>>, %arg9: memref<256x128xbf16, #tpu.memory_space<vmem>>, %arg10: memref<1x128xf32, #tpu.memory_space<vmem>>, %arg11: memref<1x128xf32, #tpu.memory_space<vmem>>, %arg12: memref<1x128xf32, #tpu.memory_space<vmem>>, %arg13: memref<128x128xbf16, #tpu.memory_space<vmem>>, %arg14: memref<1x128xf32, #tpu.memory_space<vmem>>, %arg15: memref<224x128xf32, #tpu.memory_space<vmem>>) attributes {dimension_semantics = [#tpu.dimension_semantics<arbitrary>], iteration_bounds = array<i64: 1>, scalar_prefetch = 1 : i64, scratch_operands = 0 : i64, tpu.core_type = #tpu.core_type<tc>, window_params = [{pipeline_mode = #tpu.pipeline_mode<synchronous>, transform_indices = @transform_0, window_bounds = array<i64: 224, 128>}, {pipeline_mode = #tpu.pipeline_mode<synchronous>, transform_indices = @transform_1, window_bounds = array<i64: 1, 128>}, {pipeline_mode = #tpu.pipeline_mode<synchronous>, transform_indices = @transform_2, window_bounds = array<i64: 1, 128>}, {pipeline_mode = #tpu.pipeline_mode<synchronous>, transform_indices = @transform_3, window_bounds = array<i64: 128, 256>}, {pipeline_mode = #tpu.pipeline_mode<synchronous>, transform_indices = @transform_4, window_bounds = array<i64: 1, 256>}, {pipeline_mode = #tpu.pipeline_mode<synchronous>, transform_indices = @transform_5, window_bounds = array<i64: 1, 256>}, {pipeline_mode = #tpu.pipeline_mode<synchronous>, transform_indices = @transform_6, window_bounds = array<i64: 1, 256>}, {pipeline_mode = #tpu.pipeline_mode<synchronous>, transform_indices = @transform_7, window_bounds = array<i64: 256, 128>}, {pipeline_mode = #tpu.pipeline_mode<synchronous>, transform_indices = @transform_8, window_bounds = array<i64: 1, 128>}, {pipeline_mode = #tpu.pipeline_mode<synchronous>, transform_indices = @transform_9, window_bounds = array<i64: 1, 128>}, {pipeline_mode = #tpu.pipeline_mode<synchronous>, transform_indices = @transform_10, window_bounds = array<i64: 1, 128>}, {pipeline_mode = #tpu.pipeline_mode<synchronous>, transform_indices = @transform_11, window_bounds = array<i64: 128, 128>}, {pipeline_mode = #tpu.pipeline_mode<synchronous>, transform_indices = @transform_12, window_bounds = array<i64: 1, 128>}, {pipeline_mode = #tpu.pipeline_mode<synchronous>, transform_indices = @transform_13, window_bounds = array<i64: 224, 128>}]} {
    %c0 = arith.constant 0 : index
    %0 = memref.load %arg1[%c0] : memref<1xi32, #tpu.memory_space<smem>>
    %1 = arith.sitofp %0 : i32 to f32
    %cst = arith.constant 1.000000e+00 : f32
    %2 = arith.divf %cst, %1 : f32
    %3 = tpu.iota {dimensions = array<i32: 0>} : vector<224x1xi32>
    %4 = vector.broadcast %0 : i32 to vector<224x1xi32>
    %5 = arith.cmpi slt, %3, %4 : vector<224x1xi32>
    %c0_0 = arith.constant 0 : index
    %c0_1 = arith.constant 0 : index
    %6 = vector.load %arg2[%c0_0, %c0_1] : memref<224x128xf32, #tpu.memory_space<vmem>>, vector<224x128xf32>
    %c0_2 = arith.constant 0 : index
    %c0_3 = arith.constant 0 : index
    %7 = vector.load %arg3[%c0_2, %c0_3] : memref<1x128xf32, #tpu.memory_space<vmem>>, vector<1x128xf32>
    %c0_4 = arith.constant 0 : index
    %c0_5 = arith.constant 0 : index
    %8 = vector.load %arg4[%c0_4, %c0_5] : memref<1x128xf32, #tpu.memory_space<vmem>>, vector<1x128xf32>
    %cst_6 = arith.constant dense<0.000000e+00> : vector<128xf32>
    %9 = vector.multi_reduction <add>, %6, %cst_6 [0] : vector<224x128xf32> to vector<128xf32>
    %10 = vector.shape_cast %9 : vector<128xf32> to vector<1x128xf32>
    %11 = arith.mulf %6, %6 : vector<224x128xf32>
    %cst_7 = arith.constant dense<0.000000e+00> : vector<128xf32>
    %12 = vector.multi_reduction <add>, %11, %cst_7 [0] : vector<224x128xf32> to vector<128xf32>
    %13 = vector.shape_cast %12 : vector<128xf32> to vector<1x128xf32>
    %14 = vector.broadcast %2 : f32 to vector<1x128xf32>
    %15 = arith.mulf %10, %14 : vector<1x128xf32>
    %16 = vector.broadcast %2 : f32 to vector<1x128xf32>
    %17 = arith.mulf %13, %16 : vector<1x128xf32>
    %18 = arith.mulf %15, %15 : vector<1x128xf32>
    %19 = arith.subf %17, %18 : vector<1x128xf32>
    %cst_8 = arith.constant 0.000000e+00 : f32
    %20 = vector.broadcast %cst_8 : f32 to vector<1x128xf32>
    %21 = arith.maximumf %19, %20 : vector<1x128xf32>
    %cst_9 = arith.constant 9.99999974E-6 : f32
    %22 = vector.broadcast %cst_9 : f32 to vector<1x128xf32>
    %23 = arith.addf %21, %22 : vector<1x128xf32>
    %24 = math.rsqrt %23 : vector<1x128xf32>
    %25 = arith.mulf %24, %7 : vector<1x128xf32>
    %26 = arith.mulf %15, %25 : vector<1x128xf32>
    %27 = arith.subf %8, %26 : vector<1x128xf32>
    %28 = vector.broadcast %25 : vector<1x128xf32> to vector<224x128xf32>
    %29 = arith.mulf %6, %28 : vector<224x128xf32>
    %30 = vector.broadcast %27 : vector<1x128xf32> to vector<224x128xf32>
    %31 = arith.addf %29, %30 : vector<224x128xf32>
    %32 = arith.truncf %31 : vector<224x128xf32> to vector<224x128xbf16>
    %c0_10 = arith.constant 0 : index
    %c0_11 = arith.constant 0 : index
    %33 = vector.load %arg5[%c0_10, %c0_11] : memref<128x256xbf16, #tpu.memory_space<vmem>>, vector<128x256xbf16>
    %cst_12 = arith.constant dense<0.000000e+00> : vector<224x256xf32>
    %34 = tpu.matmul %32, %33, %cst_12 {dimension_numbers = #tpu.dot_dimension_numbers<[1], [0], [0], [1], [0, 0, 1, 1], [], []>} : vector<224x128xbf16>, vector<128x256xbf16>, vector<224x256xf32> -> vector<224x256xf32>
    %c0_13 = arith.constant 0 : index
    %c0_14 = arith.constant 0 : index
    %35 = vector.load %arg6[%c0_13, %c0_14] : memref<1x256xf32, #tpu.memory_space<vmem>>, vector<1x256xf32>
    %36 = vector.broadcast %35 : vector<1x256xf32> to vector<224x256xf32>
    %37 = arith.addf %34, %36 : vector<224x256xf32>
    %cst_15 = arith.constant 0.000000e+00 : f32
    %38 = vector.broadcast %cst_15 : f32 to vector<224x256xf32>
    %39 = arith.maximumf %37, %38 : vector<224x256xf32>
    %cst_16 = arith.constant 0.000000e+00 : f32
    %40 = vector.shape_cast %5 : vector<224x1xi1> to vector<224x1xi1>
    %41 = vector.broadcast %40 : vector<224x1xi1> to vector<224x256xi1>
    %42 = vector.broadcast %cst_16 : f32 to vector<224x256xf32>
    %43 = arith.select %41, %39, %42 : vector<224x256xi1>, vector<224x256xf32>
    %c0_17 = arith.constant 0 : index
    %c0_18 = arith.constant 0 : index
    %44 = vector.load %arg7[%c0_17, %c0_18] : memref<1x256xf32, #tpu.memory_space<vmem>>, vector<1x256xf32>
    %c0_19 = arith.constant 0 : index
    %c0_20 = arith.constant 0 : index
    %45 = vector.load %arg8[%c0_19, %c0_20] : memref<1x256xf32, #tpu.memory_space<vmem>>, vector<1x256xf32>
    %cst_21 = arith.constant dense<0.000000e+00> : vector<256xf32>
    %46 = vector.multi_reduction <add>, %43, %cst_21 [0] : vector<224x256xf32> to vector<256xf32>
    %47 = vector.shape_cast %46 : vector<256xf32> to vector<1x256xf32>
    %48 = arith.mulf %43, %43 : vector<224x256xf32>
    %cst_22 = arith.constant dense<0.000000e+00> : vector<256xf32>
    %49 = vector.multi_reduction <add>, %48, %cst_22 [0] : vector<224x256xf32> to vector<256xf32>
    %50 = vector.shape_cast %49 : vector<256xf32> to vector<1x256xf32>
    %51 = vector.broadcast %2 : f32 to vector<1x256xf32>
    %52 = arith.mulf %47, %51 : vector<1x256xf32>
    %53 = vector.broadcast %2 : f32 to vector<1x256xf32>
    %54 = arith.mulf %50, %53 : vector<1x256xf32>
    %55 = arith.mulf %52, %52 : vector<1x256xf32>
    %56 = arith.subf %54, %55 : vector<1x256xf32>
    %cst_23 = arith.constant 0.000000e+00 : f32
    %57 = vector.broadcast %cst_23 : f32 to vector<1x256xf32>
    %58 = arith.maximumf %56, %57 : vector<1x256xf32>
    %cst_24 = arith.constant 9.99999974E-6 : f32
    %59 = vector.broadcast %cst_24 : f32 to vector<1x256xf32>
    %60 = arith.addf %58, %59 : vector<1x256xf32>
    %61 = math.rsqrt %60 : vector<1x256xf32>
    %62 = arith.mulf %61, %44 : vector<1x256xf32>
    %63 = arith.mulf %52, %62 : vector<1x256xf32>
    %64 = arith.subf %45, %63 : vector<1x256xf32>
    %65 = vector.broadcast %62 : vector<1x256xf32> to vector<224x256xf32>
    %66 = arith.mulf %43, %65 : vector<224x256xf32>
    %67 = vector.broadcast %64 : vector<1x256xf32> to vector<224x256xf32>
    %68 = arith.addf %66, %67 : vector<224x256xf32>
    %69 = arith.truncf %68 : vector<224x256xf32> to vector<224x256xbf16>
    %c0_25 = arith.constant 0 : index
    %c0_26 = arith.constant 0 : index
    %70 = vector.load %arg9[%c0_25, %c0_26] : memref<256x128xbf16, #tpu.memory_space<vmem>>, vector<256x128xbf16>
    %cst_27 = arith.constant dense<0.000000e+00> : vector<224x128xf32>
    %71 = tpu.matmul %69, %70, %cst_27 {dimension_numbers = #tpu.dot_dimension_numbers<[1], [0], [0], [1], [0, 0, 1, 1], [], []>} : vector<224x256xbf16>, vector<256x128xbf16>, vector<224x128xf32> -> vector<224x128xf32>
    %c0_28 = arith.constant 0 : index
    %c0_29 = arith.constant 0 : index
    %72 = vector.load %arg10[%c0_28, %c0_29] : memref<1x128xf32, #tpu.memory_space<vmem>>, vector<1x128xf32>
    %73 = vector.broadcast %72 : vector<1x128xf32> to vector<224x128xf32>
    %74 = arith.addf %71, %73 : vector<224x128xf32>
    %cst_30 = arith.constant 0.000000e+00 : f32
    %75 = vector.broadcast %cst_30 : f32 to vector<224x128xf32>
    %76 = arith.maximumf %74, %75 : vector<224x128xf32>
    %cst_31 = arith.constant 0.000000e+00 : f32
    %77 = vector.shape_cast %5 : vector<224x1xi1> to vector<224x1xi1>
    %78 = vector.broadcast %77 : vector<224x1xi1> to vector<224x128xi1>
    %79 = vector.broadcast %cst_31 : f32 to vector<224x128xf32>
    %80 = arith.select %78, %76, %79 : vector<224x128xi1>, vector<224x128xf32>
    %c0_32 = arith.constant 0 : index
    %c0_33 = arith.constant 0 : index
    %81 = vector.load %arg11[%c0_32, %c0_33] : memref<1x128xf32, #tpu.memory_space<vmem>>, vector<1x128xf32>
    %c0_34 = arith.constant 0 : index
    %c0_35 = arith.constant 0 : index
    %82 = vector.load %arg12[%c0_34, %c0_35] : memref<1x128xf32, #tpu.memory_space<vmem>>, vector<1x128xf32>
    %cst_36 = arith.constant dense<0.000000e+00> : vector<128xf32>
    %83 = vector.multi_reduction <add>, %80, %cst_36 [0] : vector<224x128xf32> to vector<128xf32>
    %84 = vector.shape_cast %83 : vector<128xf32> to vector<1x128xf32>
    %85 = arith.mulf %80, %80 : vector<224x128xf32>
    %cst_37 = arith.constant dense<0.000000e+00> : vector<128xf32>
    %86 = vector.multi_reduction <add>, %85, %cst_37 [0] : vector<224x128xf32> to vector<128xf32>
    %87 = vector.shape_cast %86 : vector<128xf32> to vector<1x128xf32>
    %88 = vector.broadcast %2 : f32 to vector<1x128xf32>
    %89 = arith.mulf %84, %88 : vector<1x128xf32>
    %90 = vector.broadcast %2 : f32 to vector<1x128xf32>
    %91 = arith.mulf %87, %90 : vector<1x128xf32>
    %92 = arith.mulf %89, %89 : vector<1x128xf32>
    %93 = arith.subf %91, %92 : vector<1x128xf32>
    %cst_38 = arith.constant 0.000000e+00 : f32
    %94 = vector.broadcast %cst_38 : f32 to vector<1x128xf32>
    %95 = arith.maximumf %93, %94 : vector<1x128xf32>
    %cst_39 = arith.constant 9.99999974E-6 : f32
    %96 = vector.broadcast %cst_39 : f32 to vector<1x128xf32>
    %97 = arith.addf %95, %96 : vector<1x128xf32>
    %98 = math.rsqrt %97 : vector<1x128xf32>
    %99 = arith.mulf %98, %81 : vector<1x128xf32>
    %100 = arith.mulf %89, %99 : vector<1x128xf32>
    %101 = arith.subf %82, %100 : vector<1x128xf32>
    %102 = vector.broadcast %99 : vector<1x128xf32> to vector<224x128xf32>
    %103 = arith.mulf %80, %102 : vector<224x128xf32>
    %104 = vector.broadcast %101 : vector<1x128xf32> to vector<224x128xf32>
    %105 = arith.addf %103, %104 : vector<224x128xf32>
    %106 = arith.truncf %105 : vector<224x128xf32> to vector<224x128xbf16>
    %c0_40 = arith.constant 0 : index
    %c0_41 = arith.constant 0 : index
    %107 = vector.load %arg13[%c0_40, %c0_41] : memref<128x128xbf16, #tpu.memory_space<vmem>>, vector<128x128xbf16>
    %cst_42 = arith.constant dense<0.000000e+00> : vector<224x128xf32>
    %108 = tpu.matmul %106, %107, %cst_42 {dimension_numbers = #tpu.dot_dimension_numbers<[1], [0], [0], [1], [0, 0, 1, 1], [], []>} : vector<224x128xbf16>, vector<128x128xbf16>, vector<224x128xf32> -> vector<224x128xf32>
    %c0_43 = arith.constant 0 : index
    %c0_44 = arith.constant 0 : index
    %109 = vector.load %arg14[%c0_43, %c0_44] : memref<1x128xf32, #tpu.memory_space<vmem>>, vector<1x128xf32>
    %110 = vector.broadcast %109 : vector<1x128xf32> to vector<224x128xf32>
    %111 = arith.addf %108, %110 : vector<224x128xf32>
    %cst_45 = arith.constant 0.000000e+00 : f32
    %112 = vector.broadcast %cst_45 : f32 to vector<224x128xf32>
    %113 = arith.maximumf %111, %112 : vector<224x128xf32>
    %cst_46 = arith.constant 0.000000e+00 : f32
    %114 = vector.shape_cast %5 : vector<224x1xi1> to vector<224x1xi1>
    %115 = vector.broadcast %114 : vector<224x1xi1> to vector<224x128xi1>
    %116 = vector.broadcast %cst_46 : f32 to vector<224x128xf32>
    %117 = arith.select %115, %113, %116 : vector<224x128xi1>, vector<224x128xf32>
    %c0_47 = arith.constant 0 : index
    %c0_48 = arith.constant 0 : index
    %118 = vector.load %arg15[%c0_47, %c0_48] : memref<224x128xf32, #tpu.memory_space<vmem>>, vector<224x128xf32>
    tpu.vector_store %arg15[%c0_47, %c0_48], %117 {strides = array<i32>} : memref<224x128xf32, #tpu.memory_space<vmem>>, vector<224x128xf32>,
    return
  }
  func.func @transform_0(%arg0: i32, %arg1: memref<1xi32, #tpu.memory_space<smem>>) -> (i32, i32) {
    %c0_i32 = arith.constant 0 : i32
    %c0_i32_0 = arith.constant 0 : i32
    %c0_i32_1 = arith.constant 0 : i32
    return %c0_i32, %c0_i32_0 : i32, i32
  }
  func.func @transform_1(%arg0: i32, %arg1: memref<1xi32, #tpu.memory_space<smem>>) -> (i32, i32) {
    %c0_i32 = arith.constant 0 : i32
    %c0_i32_0 = arith.constant 0 : i32
    %c0_i32_1 = arith.constant 0 : i32
    return %c0_i32, %c0_i32_0 : i32, i32
  }
  func.func @transform_2(%arg0: i32, %arg1: memref<1xi32, #tpu.memory_space<smem>>) -> (i32, i32) {
    %c0_i32 = arith.constant 0 : i32
    %c0_i32_0 = arith.constant 0 : i32
    %c0_i32_1 = arith.constant 0 : i32
    return %c0_i32, %c0_i32_0 : i32, i32
  }
  func.func @transform_3(%arg0: i32, %arg1: memref<1xi32, #tpu.memory_space<smem>>) -> (i32, i32) {
    %c0_i32 = arith.constant 0 : i32
    %c0_i32_0 = arith.constant 0 : i32
    %c0_i32_1 = arith.constant 0 : i32
    return %c0_i32, %c0_i32_0 : i32, i32
  }
  func.func @transform_4(%arg0: i32, %arg1: memref<1xi32, #tpu.memory_space<smem>>) -> (i32, i32) {
    %c0_i32 = arith.constant 0 : i32
    %c0_i32_0 = arith.constant 0 : i32
    %c0_i32_1 = arith.constant 0 : i32
    return %c0_i32, %c0_i32_0 : i32, i32
  }
  func.func @transform_5(%arg0: i32, %arg1: memref<1xi32, #tpu.memory_space<smem>>) -> (i32, i32) {
    %c0_i32 = arith.constant 0 : i32
    %c0_i32_0 = arith.constant 0 : i32
    %c0_i32_1 = arith.constant 0 : i32
    return %c0_i32, %c0_i32_0 : i32, i32
  }
  func.func @transform_6(%arg0: i32, %arg1: memref<1xi32, #tpu.memory_space<smem>>) -> (i32, i32) {
    %c0_i32 = arith.constant 0 : i32
    %c0_i32_0 = arith.constant 0 : i32
    %c0_i32_1 = arith.constant 0 : i32
    return %c0_i32, %c0_i32_0 : i32, i32
  }
  func.func @transform_7(%arg0: i32, %arg1: memref<1xi32, #tpu.memory_space<smem>>) -> (i32, i32) {
    %c0_i32 = arith.constant 0 : i32
    %c0_i32_0 = arith.constant 0 : i32
    %c0_i32_1 = arith.constant 0 : i32
    return %c0_i32, %c0_i32_0 : i32, i32
  }
  func.func @transform_8(%arg0: i32, %arg1: memref<1xi32, #tpu.memory_space<smem>>) -> (i32, i32) {
    %c0_i32 = arith.constant 0 : i32
    %c0_i32_0 = arith.constant 0 : i32
    %c0_i32_1 = arith.constant 0 : i32
    return %c0_i32, %c0_i32_0 : i32, i32
  }
  func.func @transform_9(%arg0: i32, %arg1: memref<1xi32, #tpu.memory_space<smem>>) -> (i32, i32) {
    %c0_i32 = arith.constant 0 : i32
    %c0_i32_0 = arith.constant 0 : i32
    %c0_i32_1 = arith.constant 0 : i32
    return %c0_i32, %c0_i32_0 : i32, i32
  }
  func.func @transform_10(%arg0: i32, %arg1: memref<1xi32, #tpu.memory_space<smem>>) -> (i32, i32) {
    %c0_i32 = arith.constant 0 : i32
    %c0_i32_0 = arith.constant 0 : i32
    %c0_i32_1 = arith.constant 0 : i32
    return %c0_i32, %c0_i32_0 : i32, i32
  }
  func.func @transform_11(%arg0: i32, %arg1: memref<1xi32, #tpu.memory_space<smem>>) -> (i32, i32) {
    %c0_i32 = arith.constant 0 : i32
    %c0_i32_0 = arith.constant 0 : i32
    %c0_i32_1 = arith.constant 0 : i32
    return %c0_i32, %c0_i32_0 : i32, i32
  }
  func.func @transform_12(%arg0: i32, %arg1: memref<1xi32, #tpu.memory_space<smem>>) -> (i32, i32) {
    %c0_i32 = arith.constant 0 : i32
    %c0_i32_0 = arith.constant 0 : i32
    %c0_i32_1 = arith.constant 0 : i32
    return %c0_i32, %c0_i32_0 : i32, i32
  }
  func.func @transform_13(%arg0: i32, %arg1: memref<1xi32, #tpu.memory_space<smem>>) -> (i32, i32) {
    %c0_i32 = arith.constant 0 : i32
    %c0_i32_0 = arith.constant 0 : i32
    %c0_i32_1 = arith.constant 0 : i32
    return %c0_i32, %c0_i32_0 : i32, i32
  }
}

</mosaic_0001>

<llo_original>
// kernel: tpu_custom_call.1
$region0: #{tpu_custom_call.1}
  #allocation0 [shape = 'u32[]', space=smem, size = 0x4, offset = 0x4, fixed_abs, tag = 'smem constant byte address 0x4 - core index']
  #allocation1 [shape = 'u32[144,128]{1,0:T(1,128)}', space=vmem, size = 0x12000, scoped, tag = 'internal scratch']
  #allocation2 [shape = 's32[1]{0}', space=sflag, size = 0x4, scoped, tag = 'scoped memory for tpu_custom_call.1']
  #allocation3 [shape = 's32[1]{0:T(128)S(6)}', space=smem, size = 0x200, scoped, tag = 'prefetched SMEM operand 0']
  %s0 = inlined_call_operand.<no memory space> [shape: s32[1], index: 0, kind: input, shape index: {}]
  %s1 = inlined_call_operand.hbm [shape: f32[224,128], index: 1, kind: input, shape index: {}]
  %s2 = inlined_call_operand.vmem [shape: f32[1,128], index: 2, kind: input, shape index: {}]
  %s3 = inlined_call_operand.vmem [shape: f32[1,128], index: 3, kind: input, shape index: {}]
  %s4 = inlined_call_operand.hbm [shape: bf16[128,256], index: 4, kind: input, shape index: {}]
  %s5 = inlined_call_operand.vmem [shape: f32[1,256], index: 5, kind: input, shape index: {}]
  %s6 = inlined_call_operand.vmem [shape: f32[1,256], index: 6, kind: input, shape index: {}]
  %s7 = inlined_call_operand.vmem [shape: f32[1,256], index: 7, kind: input, shape index: {}]
  %s8 = inlined_call_operand.hbm [shape: bf16[256,128], index: 8, kind: input, shape index: {}]
  %s9 = inlined_call_operand.vmem [shape: f32[1,128], index: 9, kind: input, shape index: {}]
  %s10 = inlined_call_operand.vmem [shape: f32[1,128], index: 10, kind: input, shape index: {}]
  %s11 = inlined_call_operand.vmem [shape: f32[1,128], index: 11, kind: input, shape index: {}]
  %s12 = inlined_call_operand.hbm [shape: bf16[128,128], index: 12, kind: input, shape index: {}]
  %s13 = inlined_call_operand.vmem [shape: f32[1,128], index: 13, kind: input, shape index: {}]
  %s14 = inlined_call_operand.hbm [shape: f32[224,128], index: 14, kind: output, shape index: {}]
  %s15 = sld [smem:[#allocation0]]
  $region78: #{tpu_custom_call.1} parent=0
    _
  %s17 = ssub.s32 1, %s15
  %s18 = scalar_select 0, %s17, %s15
  %19 = sst [smem:[#allocation3]] %s0
  $region1: #{tpu_custom_call.1} parent=0
    #allocation4 [shape = 'u8[114688]{0}', space=vmem, size = 0x1c000, scoped, tag = 'input window, operand 1, single buffered']
    #allocation5 [shape = 's32[1]{0}', space=sflag, size = 0x4, scoped, tag = 'scoped memory for tpu_custom_call.1']
    #allocation6 [shape = 's32[1]{0}', space=sflag, size = 0x4, scoped, tag = 'scoped memory for tpu_custom_call.1']
    #allocation7 [shape = 'u8[65536]{0}', space=vmem, size = 0x10000, scoped, tag = 'input window, operand 4, single buffered']
    #allocation8 [shape = 's32[1]{0}', space=sflag, size = 0x4, scoped, tag = 'scoped memory for tpu_custom_call.1']
    #allocation9 [shape = 'u8[65536]{0}', space=vmem, size = 0x10000, scoped, tag = 'input window, operand 8, single buffered']
    #allocation10 [shape = 'u8[32768]{0}', space=vmem, size = 0x8000, scoped, tag = 'input window, operand 12, single buffered']
    #allocation11 [shape = 's32[1]{0}', space=sflag, size = 0x4, scoped, tag = 'scoped memory for tpu_custom_call.1']
    #allocation12 [shape = 'u8[114688]{0}', space=vmem, size = 0x1c000, scoped, tag = 'output window, operand 0, single buffered']
    %20 = vsyncpa [#allocation5], 0
    %21 = vsyncpa [#allocation8], 0
    %22 = vsyncpa [#allocation11], 0
    %23 = vsyncpa [#allocation6], 0
    // Predicated region
    $region2: #{tpu_custom_call.1} parent=1 // pred_check
      _
    $region3: #{tpu_custom_call.1} parent=1 // pred_check_branch
      %25 = sbr.rel (0) target = $region5
    $region4: #{tpu_custom_call.1} parent=1 // pred_region
      %s27 = ssub.s32 3584, 3584
      %28 = vsyncadd [#allocation5], %s27
      %s29 = sshll.u32 [#allocation4], 4
      %s30 = int_to_ptr.vmem [resolvable:$true] %s29
      %35 = dma.hbm_to_vmem [thread:$0]  %s1, 3584, %s30, [#allocation5], 128, 128, 8
    $region5: #{tpu_custom_call.1} parent=1 // pred_fallthru
      _
    // Predicated region
    $region6: #{tpu_custom_call.1} parent=1 // pred_check
      _
    $region7: #{tpu_custom_call.1} parent=1 // pred_check_branch
      %37 = sbr.rel (0) target = $region9
    $region8: #{tpu_custom_call.1} parent=1 // pred_region
      _
    $region9: #{tpu_custom_call.1} parent=1 // pred_fallthru
      _
    // Predicated region
    $region10: #{tpu_custom_call.1} parent=1 // pred_check
      _
    $region11: #{tpu_custom_call.1} parent=1 // pred_check_branch
      %39 = sbr.rel (0) target = $region13
    $region12: #{tpu_custom_call.1} parent=1 // pred_region
      _
    $region13: #{tpu_custom_call.1} parent=1 // pred_fallthru
      _
    // Predicated region
    $region14: #{tpu_custom_call.1} parent=1 // pred_check
      _
    $region15: #{tpu_custom_call.1} parent=1 // pred_check_branch
      %41 = sbr.rel (0) target = $region17
    $region16: #{tpu_custom_call.1} parent=1 // pred_region
      %s43 = ssub.s32 2048, 2048
      %44 = vsyncadd [#allocation8], %s43
      %s45 = sshll.u32 [#allocation7], 4
      %s46 = int_to_ptr.vmem [resolvable:$true] %s45
      %51 = dma.hbm_to_vmem [thread:$0]  %s4, 2048, %s46, [#allocation8], 128, 128, 8
    $region17: #{tpu_custom_call.1} parent=1 // pred_fallthru
      _
    // Predicated region
    $region18: #{tpu_custom_call.1} parent=1 // pred_check
      _
    $region19: #{tpu_custom_call.1} parent=1 // pred_check_branch
      %53 = sbr.rel (0) target = $region21
    $region20: #{tpu_custom_call.1} parent=1 // pred_region
      _
    $region21: #{tpu_custom_call.1} parent=1 // pred_fallthru
      _
    // Predicated region
    $region22: #{tpu_custom_call.1} parent=1 // pred_check
      _
    $region23: #{tpu_custom_call.1} parent=1 // pred_check_branch
      %55 = sbr.rel (0) target = $region25
    $region24: #{tpu_custom_call.1} parent=1 // pred_region
      _
    $region25: #{tpu_custom_call.1} parent=1 // pred_fallthru
      _
    // Predicated region
    $region26: #{tpu_custom_call.1} parent=1 // pred_check
      _
    $region27: #{tpu_custom_call.1} parent=1 // pred_check_branch
      %57 = sbr.rel (0) target = $region29
    $region28: #{tpu_custom_call.1} parent=1 // pred_region
      _
    $region29: #{tpu_custom_call.1} parent=1 // pred_fallthru
      _
    // Predicated region
    $region30: #{tpu_custom_call.1} parent=1 // pred_check
      _
    $region31: #{tpu_custom_call.1} parent=1 // pred_check_branch
      %59 = sbr.rel (0) target = $region33
    $region32: #{tpu_custom_call.1} parent=1 // pred_region
      %s61 = ssub.s32 2048, 2048
      %62 = vsyncadd [#allocation8], %s61
      %s63 = sshll.u32 [#allocation9], 4
      %s64 = int_to_ptr.vmem [resolvable:$true] %s63
      %69 = dma.hbm_to_vmem [thread:$0]  %s8, 2048, %s64, [#allocation8], 64, 64, 4
    $region33: #{tpu_custom_call.1} parent=1 // pred_fallthru
      _
    // Predicated region
    $region34: #{tpu_custom_call.1} parent=1 // pred_check
      _
    $region35: #{tpu_custom_call.1} parent=1 // pred_check_branch
      %71 = sbr.rel (0) target = $region37
    $region36: #{tpu_custom_call.1} parent=1 // pred_region
      _
    $region37: #{tpu_custom_call.1} parent=1 // pred_fallthru
      _
    // Predicated region
    $region38: #{tpu_custom_call.1} parent=1 // pred_check
      _
    $region39: #{tpu_custom_call.1} parent=1 // pred_check_branch
      %73 = sbr.rel (0) target = $region41
    $region40: #{tpu_custom_call.1} parent=1 // pred_region
      _
    $region41: #{tpu_custom_call.1} parent=1 // pred_fallthru
      _
    // Predicated region
    $region42: #{tpu_custom_call.1} parent=1 // pred_check
      _
    $region43: #{tpu_custom_call.1} parent=1 // pred_check_branch
      %75 = sbr.rel (0) target = $region45
    $region44: #{tpu_custom_call.1} parent=1 // pred_region
      _
    $region45: #{tpu_custom_call.1} parent=1 // pred_fallthru
      _
    // Predicated region
    $region46: #{tpu_custom_call.1} parent=1 // pred_check
      _
    $region47: #{tpu_custom_call.1} parent=1 // pred_check_branch
      %77 = sbr.rel (0) target = $region49
    $region48: #{tpu_custom_call.1} parent=1 // pred_region
      %s79 = ssub.s32 1024, 1024
      %80 = vsyncadd [#allocation11], %s79
      %s81 = sshll.u32 [#allocation10], 4
      %s82 = int_to_ptr.vmem [resolvable:$true] %s81
      %87 = dma.hbm_to_vmem [thread:$0]  %s12, 1024, %s82, [#allocation11], 64, 64, 4
    $region49: #{tpu_custom_call.1} parent=1 // pred_fallthru
      _
    // Predicated region
    $region50: #{tpu_custom_call.1} parent=1 // pred_check
      _
    $region51: #{tpu_custom_call.1} parent=1 // pred_check_branch
      %89 = sbr.rel (0) target = $region53
    $region52: #{tpu_custom_call.1} parent=1 // pred_region
      _
    $region53: #{tpu_custom_call.1} parent=1 // pred_fallthru
      _
    // Predicated region
    $region54: #{tpu_custom_call.1} parent=1 // pred_check
      _
    $region55: #{tpu_custom_call.1} parent=1 // pred_check_branch
      %91 = sbr.rel (0) target = $region57
    $region56: #{tpu_custom_call.1} parent=1 // pred_region
      %92 = dma.done [#allocation5], 3584
    $region57: #{tpu_custom_call.1} parent=1 // pred_fallthru
      _
    // Predicated region
    $region58: #{tpu_custom_call.1} parent=1 // pred_check
      _
    $region59: #{tpu_custom_call.1} parent=1 // pred_check_branch
      %94 = sbr.rel (0) target = $region61
    $region60: #{tpu_custom_call.1} parent=1 // pred_region
      %95 = dma.done [#allocation8], 2048
    $region61: #{tpu_custom_call.1} parent=1 // pred_fallthru
      _
    // Predicated region
    $region62: #{tpu_custom_call.1} parent=1 // pred_check
      _
    $region63: #{tpu_custom_call.1} parent=1 // pred_check_branch
      %97 = sbr.rel (0) target = $region65
    $region64: #{tpu_custom_call.1} parent=1 // pred_region
      %98 = dma.done [#allocation8], 2048
    $region65: #{tpu_custom_call.1} parent=1 // pred_fallthru
      _
    // Predicated region
    $region66: #{tpu_custom_call.1} parent=1 // pred_check
      _
    $region67: #{tpu_custom_call.1} parent=1 // pred_check_branch
      %100 = sbr.rel (0) target = $region69
    $region68: #{tpu_custom_call.1} parent=1 // pred_region
      %101 = dma.done [#allocation11], 1024
    $region69: #{tpu_custom_call.1} parent=1 // pred_fallthru
      _
    %s103 = sld [smem:[#allocation3]]
    %s104 = scvt.s32.f32 %s103
    %v105 = vstv %s104
    %v106 = vrcp.pop %v105
    %s107 = vtos %v106
    %v108 = vlaneseq
    %v109 = vshrl.u32 %v108, 7
    %v110 = vadd.s32 %v109, 8
    %v111 = vadd.s32 %v109, 16
    %v112 = vadd.s32 %v109, 24
    %v113 = vadd.s32 %v109, 32
    %v114 = vadd.s32 %v109, 40
    %v115 = vadd.s32 %v109, 48
    %v116 = vadd.s32 %v109, 56
    %v117 = vadd.s32 %v109, 64
    %v118 = vadd.s32 %v109, 72
    %v119 = vadd.s32 %v109, 80
    %v120 = vadd.s32 %v109, 88
    %v121 = vadd.s32 %v109, 96
    %v122 = vadd.s32 %v109, 104
    %v123 = vadd.s32 %v109, 112
    %v124 = vadd.s32 %v109, 120
    %v125 = vadd.s32 %v109, 128
    %v126 = vadd.s32 %v109, 136
    %v127 = vadd.s32 %v109, 144
    %v128 = vadd.s32 %v109, 152
    %v129 = vadd.s32 %v109, 160
    %v130 = vadd.s32 %v109, 168
    %v131 = vadd.s32 %v109, 176
    %v132 = vadd.s32 %v109, 184
    %v133 = vadd.s32 %v109, 192
    %v134 = vadd.s32 %v109, 200
    %v135 = vadd.s32 %v109, 208
    %v136 = vadd.s32 %v109, 216
    %v137 = vstv %s103
    %vm138 = vcmp.lt.s32.totalorder %v109, %v137
    %vm139 = vcmp.lt.s32.totalorder %v110, %v137
    %vm140 = vcmp.lt.s32.totalorder %v111, %v137
    %vm141 = vcmp.lt.s32.totalorder %v112, %v137
    %vm142 = vcmp.lt.s32.totalorder %v113, %v137
    %vm143 = vcmp.lt.s32.totalorder %v114, %v137
    %vm144 = vcmp.lt.s32.totalorder %v115, %v137
    %vm145 = vcmp.lt.s32.totalorder %v116, %v137
    %vm146 = vcmp.lt.s32.totalorder %v117, %v137
    %vm147 = vcmp.lt.s32.totalorder %v118, %v137
    %vm148 = vcmp.lt.s32.totalorder %v119, %v137
    %vm149 = vcmp.lt.s32.totalorder %v120, %v137
    %vm150 = vcmp.lt.s32.totalorder %v121, %v137
    %vm151 = vcmp.lt.s32.totalorder %v122, %v137
    %vm152 = vcmp.lt.s32.totalorder %v123, %v137
    %vm153 = vcmp.lt.s32.totalorder %v124, %v137
    %vm154 = vcmp.lt.s32.totalorder %v125, %v137
    %vm155 = vcmp.lt.s32.totalorder %v126, %v137
    %vm156 = vcmp.lt.s32.totalorder %v127, %v137
    %vm157 = vcmp.lt.s32.totalorder %v128, %v137
    %vm158 = vcmp.lt.s32.totalorder %v129, %v137
    %vm159 = vcmp.lt.s32.totalorder %v130, %v137
    %vm160 = vcmp.lt.s32.totalorder %v131, %v137
    %vm161 = vcmp.lt.s32.totalorder %v132, %v137
    %vm162 = vcmp.lt.s32.totalorder %v133, %v137
    %vm163 = vcmp.lt.s32.totalorder %v134, %v137
    %vm164 = vcmp.lt.s32.totalorder %v135, %v137
    %vm165 = vcmp.lt.s32.totalorder %v136, %v137
    %v166 = vld [vmem:[#allocation4] sm:$0xff]
    %v167 = vld [vmem:[#allocation4 + $0x8] sm:$0xff]
    %v168 = vld [vmem:[#allocation4 + $0x10] sm:$0xff]
    %v169 = vld [vmem:[#allocation4 + $0x18] sm:$0xff]
    %v170 = vld [vmem:[#allocation4 + $0x20] sm:$0xff]
    %v171 = vld [vmem:[#allocation4 + $0x28] sm:$0xff]
    %v172 = vld [vmem:[#allocation4 + $0x30] sm:$0xff]
    %v173 = vld [vmem:[#allocation4 + $0x38] sm:$0xff]
    %v174 = vld [vmem:[#allocation4 + $0x40] sm:$0xff]
    %v175 = vld [vmem:[#allocation4 + $0x48] sm:$0xff]
    %v176 = vld [vmem:[#allocation4 + $0x50] sm:$0xff]
    %v177 = vld [vmem:[#allocation4 + $0x58] sm:$0xff]
    %v178 = vld [vmem:[#allocation4 + $0x60] sm:$0xff]
    %v179 = vld [vmem:[#allocation4 + $0x68] sm:$0xff]
    %v180 = vld [vmem:[#allocation4 + $0x70] sm:$0xff]
    %v181 = vld [vmem:[#allocation4 + $0x78] sm:$0xff]
    %v182 = vld [vmem:[#allocation4 + $0x80] sm:$0xff]
    %v183 = vld [vmem:[#allocation4 + $0x88] sm:$0xff]
    %v184 = vld [vmem:[#allocation4 + $0x90] sm:$0xff]
    %v185 = vld [vmem:[#allocation4 + $0x98] sm:$0xff]
    %v186 = vld [vmem:[#allocation4 + $0xa0] sm:$0xff]
    %v187 = vld [vmem:[#allocation4 + $0xa8] sm:$0xff]
    %v188 = vld [vmem:[#allocation4 + $0xb0] sm:$0xff]
    %v189 = vld [vmem:[#allocation4 + $0xb8] sm:$0xff]
    %v190 = vld [vmem:[#allocation4 + $0xc0] sm:$0xff]
    %v191 = vld [vmem:[#allocation4 + $0xc8] sm:$0xff]
    %v192 = vld [vmem:[#allocation4 + $0xd0] sm:$0xff]
    %v193 = vld [vmem:[#allocation4 + $0xd8] sm:$0xff]
    %v194 = vld [vmem:[%s2] sm:$0x1]
    %v195 = vld [vmem:[%s3] sm:$0x1]
    %v196 = vadd.f32 %v166, %v167
    %v197 = vadd.f32 %v196, %v168
    %v198 = vadd.f32 %v197, %v169
    %v199 = vadd.f32 %v198, %v170
    %v200 = vadd.f32 %v199, %v171
    %v201 = vadd.f32 %v200, %v172
    %v202 = vadd.f32 %v201, %v173
    %v203 = vadd.f32 %v202, %v174
    %v204 = vadd.f32 %v203, %v175
    %v205 = vadd.f32 %v204, %v176
    %v206 = vadd.f32 %v205, %v177
    %v207 = vadd.f32 %v206, %v178
    %v208 = vadd.f32 %v207, %v179
    %v209 = vadd.f32 %v208, %v180
    %v210 = vadd.f32 %v209, %v181
    %v211 = vadd.f32 %v210, %v182
    %v212 = vadd.f32 %v211, %v183
    %v213 = vadd.f32 %v212, %v184
    %v214 = vadd.f32 %v213, %v185
    %v215 = vadd.f32 %v214, %v186
    %v216 = vadd.f32 %v215, %v187
    %v217 = vadd.f32 %v216, %v188
    %v218 = vadd.f32 %v217, %v189
    %v219 = vadd.f32 %v218, %v190
    %v220 = vadd.f32 %v219, %v191
    %v221 = vadd.f32 %v220, %v192
    %v222 = vadd.f32 %v221, %v193
    %v223 = vrot.slane %v222, 4
    %v224 = vadd.f32 %v222, %v223
    %v225 = vrot.slane %v224, 2
    %v226 = vadd.f32 %v224, %v225
    %v227 = vrot.slane %v226, 1
    %v228 = vadd.f32 %v226, %v227
    %v229 = vmul.f32 %v166, %v166
    %v230 = vmul.f32 %v167, %v167
    %v231 = vmul.f32 %v168, %v168
    %v232 = vmul.f32 %v169, %v169
    %v233 = vmul.f32 %v170, %v170
    %v234 = vmul.f32 %v171, %v171
    %v235 = vmul.f32 %v172, %v172
    %v236 = vmul.f32 %v173, %v173
    %v237 = vmul.f32 %v174, %v174
    %v238 = vmul.f32 %v175, %v175
    %v239 = vmul.f32 %v176, %v176
    %v240 = vmul.f32 %v177, %v177
    %v241 = vmul.f32 %v178, %v178
    %v242 = vmul.f32 %v179, %v179
    %v243 = vmul.f32 %v180, %v180
    %v244 = vmul.f32 %v181, %v181
    %v245 = vmul.f32 %v182, %v182
    %v246 = vmul.f32 %v183, %v183
    %v247 = vmul.f32 %v184, %v184
    %v248 = vmul.f32 %v185, %v185
    %v249 = vmul.f32 %v186, %v186
    %v250 = vmul.f32 %v187, %v187
    %v251 = vmul.f32 %v188, %v188
    %v252 = vmul.f32 %v189, %v189
    %v253 = vmul.f32 %v190, %v190
    %v254 = vmul.f32 %v191, %v191
    %v255 = vmul.f32 %v192, %v192
    %v256 = vmul.f32 %v193, %v193
    %v257 = vadd.f32 %v229, %v230
    %v258 = vadd.f32 %v257, %v231
    %v259 = vadd.f32 %v258, %v232
    %v260 = vadd.f32 %v259, %v233
    %v261 = vadd.f32 %v260, %v234
    %v262 = vadd.f32 %v261, %v235
    %v263 = vadd.f32 %v262, %v236
    %v264 = vadd.f32 %v263, %v237
    %v265 = vadd.f32 %v264, %v238
    %v266 = vadd.f32 %v265, %v239
    %v267 = vadd.f32 %v266, %v240
    %v268 = vadd.f32 %v267, %v241
    %v269 = vadd.f32 %v268, %v242
    %v270 = vadd.f32 %v269, %v243
    %v271 = vadd.f32 %v270, %v244
    %v272 = vadd.f32 %v271, %v245
    %v273 = vadd.f32 %v272, %v246
    %v274 = vadd.f32 %v273, %v247
    %v275 = vadd.f32 %v274, %v248
    %v276 = vadd.f32 %v275, %v249
    %v277 = vadd.f32 %v276, %v250
    %v278 = vadd.f32 %v277, %v251
    %v279 = vadd.f32 %v278, %v252
    %v280 = vadd.f32 %v279, %v253
    %v281 = vadd.f32 %v280, %v254
    %v282 = vadd.f32 %v281, %v255
    %v283 = vadd.f32 %v282, %v256
    %v284 = vrot.slane %v283, 4
    %v285 = vadd.f32 %v283, %v284
    %v286 = vrot.slane %v285, 2
    %v287 = vadd.f32 %v285, %v286
    %v288 = vrot.slane %v287, 1
    %v289 = vadd.f32 %v287, %v288
    %v290 = vstv %s107
    %v291 = vmul.f32 %v228, %v290
    %v292 = vmul.f32 %v289, %v290
    %v293 = vmul.f32 %v291, %v291
    %v294 = vsub.f32 %v292, %v293
    %v295 = vmax.f32 %v294, 0.0
    %v296 = vadd.f32 %v295, 1e-05
    %v297 = vrsqrt.pop %v296
    %v298 = vmul.f32 %v297, %v194
    %v299 = vmul.f32 %v291, %v298
    %v300 = vsub.f32 %v195, %v299
    %v301 = vlaneseq
    %v302 = vshrl.u32 %v301, 7
    %v303 = vsub.s32 0, %v302
    %v304 = vrot.slane %v298, %v303
    %v305 = vmul.f32 %v166, %v304
    %v306 = vmul.f32 %v167, %v304
    %v307 = vmul.f32 %v168, %v304
    %v308 = vmul.f32 %v169, %v304
    %v309 = vmul.f32 %v170, %v304
    %v310 = vmul.f32 %v171, %v304
    %v311 = vmul.f32 %v172, %v304
    %v312 = vmul.f32 %v173, %v304
    %v313 = vmul.f32 %v174, %v304
    %v314 = vmul.f32 %v175, %v304
    %v315 = vmul.f32 %v176, %v304
    %v316 = vmul.f32 %v177, %v304
    %v317 = vmul.f32 %v178, %v304
    %v318 = vmul.f32 %v179, %v304
    %v319 = vmul.f32 %v180, %v304
    %v320 = vmul.f32 %v181, %v304
    %v321 = vmul.f32 %v182, %v304
    %v322 = vmul.f32 %v183, %v304
    %v323 = vmul.f32 %v184, %v304
    %v324 = vmul.f32 %v185, %v304
    %v325 = vmul.f32 %v186, %v304
    %v326 = vmul.f32 %v187, %v304
    %v327 = vmul.f32 %v188, %v304
    %v328 = vmul.f32 %v189, %v304
    %v329 = vmul.f32 %v190, %v304
    %v330 = vmul.f32 %v191, %v304
    %v331 = vmul.f32 %v192, %v304
    %v332 = vmul.f32 %v193, %v304
    %v334 = vlaneseq
    %v335 = vshrl.u32 %v334, 7
    %v336 = vsub.s32 0, %v335
    %v337 = vrot.slane %v300, %v336
    %v339 = vadd.f32 %v305, %v337
    %v340 = vadd.f32 %v306, %v337
    %v341 = vadd.f32 %v307, %v337
    %v342 = vadd.f32 %v308, %v337
    %v343 = vadd.f32 %v309, %v337
    %v344 = vadd.f32 %v310, %v337
    %v345 = vadd.f32 %v311, %v337
    %v346 = vadd.f32 %v312, %v337
    %v347 = vadd.f32 %v313, %v337
    %v348 = vadd.f32 %v314, %v337
    %v349 = vadd.f32 %v315, %v337
    %v350 = vadd.f32 %v316, %v337
    %v351 = vadd.f32 %v317, %v337
    %v352 = vadd.f32 %v318, %v337
    %v353 = vadd.f32 %v319, %v337
    %v354 = vadd.f32 %v320, %v337
    %v355 = vadd.f32 %v321, %v337
    %v356 = vadd.f32 %v322, %v337
    %v357 = vadd.f32 %v323, %v337
    %v358 = vadd.f32 %v324, %v337
    %v359 = vadd.f32 %v325, %v337
    %v360 = vadd.f32 %v326, %v337
    %v361 = vadd.f32 %v327, %v337
    %v362 = vadd.f32 %v328, %v337
    %v363 = vadd.f32 %v329, %v337
    %v364 = vadd.f32 %v330, %v337
    %v365 = vadd.f32 %v331, %v337
    %v366 = vadd.f32 %v332, %v337
    %v367 = vpack.c.bf16 %v340, %v339
    %v368 = vpack.c.bf16 %v342, %v341
    %v369 = vpack.c.bf16 %v344, %v343
    %v370 = vpack.c.bf16 %v346, %v345
    %v371 = vpack.c.bf16 %v348, %v347
    %v372 = vpack.c.bf16 %v350, %v349
    %v373 = vpack.c.bf16 %v352, %v351
    %v374 = vpack.c.bf16 %v354, %v353
    %v375 = vpack.c.bf16 %v356, %v355
    %v376 = vpack.c.bf16 %v358, %v357
    %v377 = vpack.c.bf16 %v360, %v359
    %v378 = vpack.c.bf16 %v362, %v361
    %v379 = vpack.c.bf16 %v364, %v363
    %v380 = vpack.c.bf16 %v366, %v365
    %v381 = vld [vmem:[#allocation7] sm:$0xff]
    %v382 = vld [vmem:[#allocation7 + $0x8] sm:$0xff]
    %v383 = vld [vmem:[#allocation7 + $0x10] sm:$0xff]
    %v384 = vld [vmem:[#allocation7 + $0x18] sm:$0xff]
    %v385 = vld [vmem:[#allocation7 + $0x20] sm:$0xff]
    %v386 = vld [vmem:[#allocation7 + $0x28] sm:$0xff]
    %v387 = vld [vmem:[#allocation7 + $0x30] sm:$0xff]
    %v388 = vld [vmem:[#allocation7 + $0x38] sm:$0xff]
    %v389 = vld [vmem:[#allocation7 + $0x40] sm:$0xff]
    %v390 = vld [vmem:[#allocation7 + $0x48] sm:$0xff]
    %v391 = vld [vmem:[#allocation7 + $0x50] sm:$0xff]
    %v392 = vld [vmem:[#allocation7 + $0x58] sm:$0xff]
    %v393 = vld [vmem:[#allocation7 + $0x60] sm:$0xff]
    %v394 = vld [vmem:[#allocation7 + $0x68] sm:$0xff]
    %v395 = vld [vmem:[#allocation7 + $0x70] sm:$0xff]
    %v396 = vld [vmem:[#allocation7 + $0x78] sm:$0xff]
    %v397 = vld [vmem:[%s5] sm:$0x3]
    %v399 = vlaneseq
    %v400 = vshrl.u32 %v399, 7
    %v401 = vsub.s32 0, %v400
    %v402 = vrot.slane %v397, %v401
    %v403 = vlaneseq
    %v404 = vshrl.u32 %v403, 7
    %v405 = vsub.s32 1, %v404
    %v406 = vrot.slane %v397, %v405
    %v425 = vunpack.c.l.b16 %v381
    %v426 = vunpack.c.h.b16 %v381
    %v427 = vunpack.c.l.b16 %v382
    %v428 = vunpack.c.h.b16 %v382
    %v429 = vunpack.c.l.b16 %v383
    %v430 = vunpack.c.h.b16 %v383
    %v431 = vunpack.c.l.b16 %v384
    %v432 = vunpack.c.h.b16 %v384
    %v433 = vunpack.c.l.b16 %v385
    %v434 = vunpack.c.h.b16 %v385
    %v435 = vunpack.c.l.b16 %v386
    %v436 = vunpack.c.h.b16 %v386
    %v437 = vunpack.c.l.b16 %v387
    %v438 = vunpack.c.h.b16 %v387
    %v439 = vunpack.c.l.b16 %v388
    %v440 = vunpack.c.h.b16 %v388
    %v441 = vunpack.c.l.b16 %v389
    %v442 = vunpack.c.h.b16 %v389
    %v443 = vunpack.c.l.b16 %v390
    %v444 = vunpack.c.h.b16 %v390
    %v445 = vunpack.c.l.b16 %v391
    %v446 = vunpack.c.h.b16 %v391
    %v447 = vunpack.c.l.b16 %v392
    %v448 = vunpack.c.h.b16 %v392
    %v449 = vunpack.c.l.b16 %v393
    %v450 = vunpack.c.h.b16 %v393
    %v451 = vunpack.c.l.b16 %v394
    %v452 = vunpack.c.h.b16 %v394
    %v453 = vunpack.c.l.b16 %v395
    %v454 = vunpack.c.h.b16 %v395
    %v455 = vunpack.c.l.b16 %v396
    %v456 = vunpack.c.h.b16 %v396
    %v457 = vpack.c.b16 %v427, %v425
    %v458 = vpack.c.b16 %v428, %v426
    %v459 = vpack.c.b16 %v431, %v429
    %v460 = vpack.c.b16 %v432, %v430
    %v461 = vpack.c.b16 %v435, %v433
    %v462 = vpack.c.b16 %v436, %v434
    %v463 = vpack.c.b16 %v439, %v437
    %v464 = vpack.c.b16 %v440, %v438
    %v465 = vpack.c.b16 %v443, %v441
    %v466 = vpack.c.b16 %v444, %v442
    %v467 = vpack.c.b16 %v447, %v445
    %v468 = vpack.c.b16 %v448, %v446
    %v469 = vpack.c.b16 %v451, %v449
    %v470 = vpack.c.b16 %v452, %v450
    %v471 = vpack.c.b16 %v455, %v453
    %v472 = vpack.c.b16 %v456, %v454
    %489 = vmatprep.subr.bf16.mxu0 %v458
    %490 = vmatpush1.bf16.msra.mxu0 %v457
    %491 = vmatprep.subr.bf16.mxu0 %v460
    %492 = vmatpush1.bf16.msra.mxu0 %v459
    %493 = vmatprep.subr.bf16.mxu0 %v462
    %494 = vmatpush1.bf16.msra.mxu0 %v461
    %495 = vmatprep.subr.bf16.mxu0 %v464
    %496 = vmatpush1.bf16.msra.mxu0 %v463
    %497 = vmatprep.subr.bf16.mxu0 %v466
    %498 = vmatpush1.bf16.msra.mxu0 %v465
    %499 = vmatprep.subr.bf16.mxu0 %v468
    %500 = vmatpush1.bf16.msra.mxu0 %v467
    %501 = vmatprep.subr.bf16.mxu0 %v470
    %502 = vmatpush1.bf16.msra.mxu0 %v469
    %503 = vmatprep.subr.bf16.mxu0 %v472
    %504 = vmatpush1.bf16.msra.mxu0 %v471
    %505 = vmatprep.subr.bf16.mxu0 0
    %506 = vmatpush1.bf16.msra.mxu0 0
    %507 = vmatprep.subr.bf16.mxu0 0
    %508 = vmatpush1.bf16.msra.mxu0 0
    %509 = vmatprep.subr.bf16.mxu0 0
    %510 = vmatpush1.bf16.msra.mxu0 0
    %511 = vmatprep.subr.bf16.mxu0 0
    %512 = vmatpush1.bf16.msra.mxu0 0
    %513 = vmatprep.subr.bf16.mxu0 0
    %514 = vmatpush1.bf16.msra.mxu0 0
    %515 = vmatprep.subr.bf16.mxu0 0
    %516 = vmatpush1.bf16.msra.mxu0 0
    %517 = vmatprep.subr.bf16.mxu0 0
    %518 = vmatpush1.bf16.msra.mxu0 0
    %519 = vmatprep.subr.bf16.mxu0 0
    %520 = vmatpush1.bf16.msra.mxu0 0
    %521 = vmatprep.mubr.bf16.mxu0 0
    %522 = vmatmul.mubr.bf16.gmra.mrb[0].mxu0 %v367
    %v523 = vpop.f32.mrb[0].mxu0
    %v524 = vadd.f32 %v402, %v523
    %v525 = vpop.f32.mrb[0].mxu0
    %v526 = vadd.f32 %v406, %v525
    %v527 = vpop.f32.mrb[0].mxu0
    %v528 = vadd.f32 %v402, %v527
    %v529 = vpop.f32.mrb[0].mxu0
    %v530 = vadd.f32 %v406, %v529
    %531 = vmatprep.mubr.bf16.mxu0 0
    %532 = vmatmul.mubr.bf16.gmra.mrb[0].mxu0 %v368
    %v533 = vpop.f32.mrb[0].mxu0
    %v534 = vadd.f32 %v402, %v533
    %v535 = vpop.f32.mrb[0].mxu0
    %v536 = vadd.f32 %v406, %v535
    %v537 = vpop.f32.mrb[0].mxu0
    %v538 = vadd.f32 %v402, %v537
    %v539 = vpop.f32.mrb[0].mxu0
    %v540 = vadd.f32 %v406, %v539
    %541 = vmatprep.mubr.bf16.mxu0 0
    %542 = vmatmul.mubr.bf16.gmra.mrb[0].mxu0 %v369
    %v543 = vpop.f32.mrb[0].mxu0
    %v544 = vadd.f32 %v402, %v543
    %v545 = vpop.f32.mrb[0].mxu0
    %v546 = vadd.f32 %v406, %v545
    %v547 = vpop.f32.mrb[0].mxu0
    %v548 = vadd.f32 %v402, %v547
    %v549 = vpop.f32.mrb[0].mxu0
    %v550 = vadd.f32 %v406, %v549
    %551 = vmatprep.mubr.bf16.mxu0 0
    %552 = vmatmul.mubr.bf16.gmra.mrb[0].mxu0 %v370
    %v553 = vpop.f32.mrb[0].mxu0
    %v554 = vadd.f32 %v402, %v553
    %v555 = vpop.f32.mrb[0].mxu0
    %v556 = vadd.f32 %v406, %v555
    %v557 = vpop.f32.mrb[0].mxu0
    %v558 = vadd.f32 %v402, %v557
    %v559 = vpop.f32.mrb[0].mxu0
    %v560 = vadd.f32 %v406, %v559
    %561 = vmatprep.mubr.bf16.mxu0 0
    %562 = vmatmul.mubr.bf16.gmra.mrb[0].mxu0 %v371
    %v563 = vpop.f32.mrb[0].mxu0
    %v564 = vadd.f32 %v402, %v563
    %v565 = vpop.f32.mrb[0].mxu0
    %v566 = vadd.f32 %v406, %v565
    %v567 = vpop.f32.mrb[0].mxu0
    %v568 = vadd.f32 %v402, %v567
    %v569 = vpop.f32.mrb[0].mxu0
    %v570 = vadd.f32 %v406, %v569
    %571 = vmatprep.mubr.bf16.mxu0 0
    %572 = vmatmul.mubr.bf16.gmra.mrb[0].mxu0 %v372
    %v573 = vpop.f32.mrb[0].mxu0
    %v574 = vadd.f32 %v402, %v573
    %v575 = vpop.f32.mrb[0].mxu0
    %v576 = vadd.f32 %v406, %v575
    %v577 = vpop.f32.mrb[0].mxu0
    %v578 = vadd.f32 %v402, %v577
    %v579 = vpop.f32.mrb[0].mxu0
    %v580 = vadd.f32 %v406, %v579
    %581 = vmatprep.mubr.bf16.mxu0 0
    %582 = vmatmul.mubr.bf16.gmra.mrb[0].mxu0 %v373
    %v583 = vpop.f32.mrb[0].mxu0
    %v584 = vadd.f32 %v402, %v583
    %v585 = vpop.f32.mrb[0].mxu0
    %v586 = vadd.f32 %v406, %v585
    %v587 = vpop.f32.mrb[0].mxu0
    %v588 = vadd.f32 %v402, %v587
    %v589 = vpop.f32.mrb[0].mxu0
    %v590 = vadd.f32 %v406, %v589
    %591 = vmatprep.mubr.bf16.mxu0 0
    %592 = vmatmul.mubr.bf16.gmra.mrb[0].mxu0 %v374
    %v593 = vpop.f32.mrb[0].mxu0
    %v594 = vadd.f32 %v402, %v593
    %v595 = vpop.f32.mrb[0].mxu0
    %v596 = vadd.f32 %v406, %v595
    %v597 = vpop.f32.mrb[0].mxu0
    %v598 = vadd.f32 %v402, %v597
    %v599 = vpop.f32.mrb[0].mxu0
    %v600 = vadd.f32 %v406, %v599
    %601 = vmatprep.mubr.bf16.mxu0 0
    %602 = vmatmul.mubr.bf16.gmra.mrb[0].mxu0 %v375
    %v603 = vpop.f32.mrb[0].mxu0
    %v604 = vadd.f32 %v402, %v603
    %v605 = vpop.f32.mrb[0].mxu0
    %v606 = vadd.f32 %v406, %v605
    %v607 = vpop.f32.mrb[0].mxu0
    %v608 = vadd.f32 %v402, %v607
    %v609 = vpop.f32.mrb[0].mxu0
    %v610 = vadd.f32 %v406, %v609
    %611 = vmatprep.mubr.bf16.mxu0 0
    %612 = vmatmul.mubr.bf16.gmra.mrb[0].mxu0 %v376
    %v613 = vpop.f32.mrb[0].mxu0
    %v614 = vadd.f32 %v402, %v613
    %v615 = vpop.f32.mrb[0].mxu0
    %v616 = vadd.f32 %v406, %v615
    %v617 = vpop.f32.mrb[0].mxu0
    %v618 = vadd.f32 %v402, %v617
    %v619 = vpop.f32.mrb[0].mxu0
    %v620 = vadd.f32 %v406, %v619
    %621 = vmatprep.mubr.bf16.mxu0 0
    %622 = vmatmul.mubr.bf16.gmra.mrb[0].mxu0 %v377
    %v623 = vpop.f32.mrb[0].mxu0
    %v624 = vadd.f32 %v402, %v623
    %v625 = vpop.f32.mrb[0].mxu0
    %v626 = vadd.f32 %v406, %v625
    %v627 = vpop.f32.mrb[0].mxu0
    %v628 = vadd.f32 %v402, %v627
    %v629 = vpop.f32.mrb[0].mxu0
    %v630 = vadd.f32 %v406, %v629
    %631 = vmatprep.mubr.bf16.mxu0 0
    %632 = vmatmul.mubr.bf16.gmra.mrb[0].mxu0 %v378
    %v633 = vpop.f32.mrb[0].mxu0
    %v634 = vadd.f32 %v402, %v633
    %v635 = vpop.f32.mrb[0].mxu0
    %v636 = vadd.f32 %v406, %v635
    %v637 = vpop.f32.mrb[0].mxu0
    %v638 = vadd.f32 %v402, %v637
    %v639 = vpop.f32.mrb[0].mxu0
    %v640 = vadd.f32 %v406, %v639
    %641 = vmatprep.mubr.bf16.mxu0 0
    %642 = vmatmul.mubr.bf16.gmra.mrb[0].mxu0 %v379
    %v643 = vpop.f32.mrb[0].mxu0
    %v644 = vadd.f32 %v402, %v643
    %v645 = vpop.f32.mrb[0].mxu0
    %v646 = vadd.f32 %v406, %v645
    %v647 = vpop.f32.mrb[0].mxu0
    %v648 = vadd.f32 %v402, %v647
    %v649 = vpop.f32.mrb[0].mxu0
    %v650 = vadd.f32 %v406, %v649
    %651 = vmatprep.mubr.bf16.mxu0 0
    %652 = vmatmul.mubr.bf16.gmra.mrb[0].mxu0 %v380
    %v653 = vpop.f32.mrb[0].mxu0
    %v654 = vadd.f32 %v402, %v653
    %v655 = vpop.f32.mrb[0].mxu0
    %v656 = vadd.f32 %v406, %v655
    %v657 = vpop.f32.mrb[0].mxu0
    %v658 = vadd.f32 %v402, %v657
    %v659 = vpop.f32.mrb[0].mxu0
    %v660 = vadd.f32 %v406, %v659
    %661 = vdwg.mxu0
    %v662 = vmax.f32 %v524, 0.0
    %v663 = vmax.f32 %v526, 0.0
    %v664 = vmax.f32 %v528, 0.0
    %v665 = vmax.f32 %v530, 0.0
    %v666 = vmax.f32 %v534, 0.0
    %v667 = vmax.f32 %v536, 0.0
    %v668 = vmax.f32 %v538, 0.0
    %v669 = vmax.f32 %v540, 0.0
    %v670 = vmax.f32 %v544, 0.0
    %v671 = vmax.f32 %v546, 0.0
    %v672 = vmax.f32 %v548, 0.0
    %v673 = vmax.f32 %v550, 0.0
    %v674 = vmax.f32 %v554, 0.0
    %v675 = vmax.f32 %v556, 0.0
    %v676 = vmax.f32 %v558, 0.0
    %v677 = vmax.f32 %v560, 0.0
    %v678 = vmax.f32 %v564, 0.0
    %v679 = vmax.f32 %v566, 0.0
    %v680 = vmax.f32 %v568, 0.0
    %v681 = vmax.f32 %v570, 0.0
    %v682 = vmax.f32 %v574, 0.0
    %v683 = vmax.f32 %v576, 0.0
    %v684 = vmax.f32 %v578, 0.0
    %v685 = vmax.f32 %v580, 0.0
    %v686 = vmax.f32 %v584, 0.0
    %v687 = vmax.f32 %v586, 0.0
    %v688 = vmax.f32 %v588, 0.0
    %v689 = vmax.f32 %v590, 0.0
    %v690 = vmax.f32 %v594, 0.0
    %v691 = vmax.f32 %v596, 0.0
    %v692 = vmax.f32 %v598, 0.0
    %v693 = vmax.f32 %v600, 0.0
    %v694 = vmax.f32 %v604, 0.0
    %v695 = vmax.f32 %v606, 0.0
    %v696 = vmax.f32 %v608, 0.0
    %v697 = vmax.f32 %v610, 0.0
    %v698 = vmax.f32 %v614, 0.0
    %v699 = vmax.f32 %v616, 0.0
    %v700 = vmax.f32 %v618, 0.0
    %v701 = vmax.f32 %v620, 0.0
    %v702 = vmax.f32 %v624, 0.0
    %v703 = vmax.f32 %v626, 0.0
    %v704 = vmax.f32 %v628, 0.0
    %v705 = vmax.f32 %v630, 0.0
    %v706 = vmax.f32 %v634, 0.0
    %v707 = vmax.f32 %v636, 0.0
    %v708 = vmax.f32 %v638, 0.0
    %v709 = vmax.f32 %v640, 0.0
    %v710 = vmax.f32 %v644, 0.0
    %v711 = vmax.f32 %v646, 0.0
    %v712 = vmax.f32 %v648, 0.0
    %v713 = vmax.f32 %v650, 0.0
    %v714 = vmax.f32 %v654, 0.0
    %v715 = vmax.f32 %v656, 0.0
    %v716 = vmax.f32 %v658, 0.0
    %v717 = vmax.f32 %v660, 0.0
    %v718 = vsel %vm138, 1, 0
    %v719 = vsel %vm139, 1, 0
    %v720 = vsel %vm140, 1, 0
    %v721 = vsel %vm141, 1, 0
    %v722 = vsel %vm142, 1, 0
    %v723 = vsel %vm143, 1, 0
    %v724 = vsel %vm144, 1, 0
    %v725 = vsel %vm145, 1, 0
    %v726 = vsel %vm146, 1, 0
    %v727 = vsel %vm147, 1, 0
    %v728 = vsel %vm148, 1, 0
    %v729 = vsel %vm149, 1, 0
    %v730 = vsel %vm150, 1, 0
    %v731 = vsel %vm151, 1, 0
    %v732 = vsel %vm152, 1, 0
    %v733 = vsel %vm153, 1, 0
    %v734 = vsel %vm154, 1, 0
    %v735 = vsel %vm155, 1, 0
    %v736 = vsel %vm156, 1, 0
    %v737 = vsel %vm157, 1, 0
    %v738 = vsel %vm158, 1, 0
    %v739 = vsel %vm159, 1, 0
    %v740 = vsel %vm160, 1, 0
    %v741 = vsel %vm161, 1, 0
    %v742 = vsel %vm162, 1, 0
    %v743 = vsel %vm163, 1, 0
    %v744 = vsel %vm164, 1, 0
    %v745 = vsel %vm165, 1, 0
    %vm746 = vcmp.eq.s32.totalorder %v718, 1
    %vm747 = vcmp.eq.s32.totalorder %v719, 1
    %vm748 = vcmp.eq.s32.totalorder %v720, 1
    %vm749 = vcmp.eq.s32.totalorder %v721, 1
    %vm750 = vcmp.eq.s32.totalorder %v722, 1
    %vm751 = vcmp.eq.s32.totalorder %v723, 1
    %vm752 = vcmp.eq.s32.totalorder %v724, 1
    %vm753 = vcmp.eq.s32.totalorder %v725, 1
    %vm754 = vcmp.eq.s32.totalorder %v726, 1
    %vm755 = vcmp.eq.s32.totalorder %v727, 1
    %vm756 = vcmp.eq.s32.totalorder %v728, 1
    %vm757 = vcmp.eq.s32.totalorder %v729, 1
    %vm758 = vcmp.eq.s32.totalorder %v730, 1
    %vm759 = vcmp.eq.s32.totalorder %v731, 1
    %vm760 = vcmp.eq.s32.totalorder %v732, 1
    %vm761 = vcmp.eq.s32.totalorder %v733, 1
    %vm762 = vcmp.eq.s32.totalorder %v734, 1
    %vm763 = vcmp.eq.s32.totalorder %v735, 1
    %vm764 = vcmp.eq.s32.totalorder %v736, 1
    %vm765 = vcmp.eq.s32.totalorder %v737, 1
    %vm766 = vcmp.eq.s32.totalorder %v738, 1
    %vm767 = vcmp.eq.s32.totalorder %v739, 1
    %vm768 = vcmp.eq.s32.totalorder %v740, 1
    %vm769 = vcmp.eq.s32.totalorder %v741, 1
    %vm770 = vcmp.eq.s32.totalorder %v742, 1
    %vm771 = vcmp.eq.s32.totalorder %v743, 1
    %vm772 = vcmp.eq.s32.totalorder %v744, 1
    %vm773 = vcmp.eq.s32.totalorder %v745, 1
    %v774 = vsel %vm746, %v662, 0.0
    %v775 = vsel %vm746, %v663, 0.0
    %v776 = vsel %vm747, %v664, 0.0
    %v777 = vsel %vm747, %v665, 0.0
    %v778 = vsel %vm748, %v666, 0.0
    %v779 = vsel %vm748, %v667, 0.0
    %v780 = vsel %vm749, %v668, 0.0
    %v781 = vsel %vm749, %v669, 0.0
    %v782 = vsel %vm750, %v670, 0.0
    %v783 = vsel %vm750, %v671, 0.0
    %v784 = vsel %vm751, %v672, 0.0
    %v785 = vsel %vm751, %v673, 0.0
    %v786 = vsel %vm752, %v674, 0.0
    %v787 = vsel %vm752, %v675, 0.0
    %v788 = vsel %vm753, %v676, 0.0
    %v789 = vsel %vm753, %v677, 0.0
    %v790 = vsel %vm754, %v678, 0.0
    %v791 = vsel %vm754, %v679, 0.0
    %v792 = vsel %vm755, %v680, 0.0
    %v793 = vsel %vm755, %v681, 0.0
    %v794 = vsel %vm756, %v682, 0.0
    %v795 = vsel %vm756, %v683, 0.0
    %v796 = vsel %vm757, %v684, 0.0
    %v797 = vsel %vm757, %v685, 0.0
    %v798 = vsel %vm758, %v686, 0.0
    %v799 = vsel %vm758, %v687, 0.0
    %v800 = vsel %vm759, %v688, 0.0
    %v801 = vsel %vm759, %v689, 0.0
    %v802 = vsel %vm760, %v690, 0.0
    %v803 = vsel %vm760, %v691, 0.0
    %v804 = vsel %vm761, %v692, 0.0
    %v805 = vsel %vm761, %v693, 0.0
    %v806 = vsel %vm762, %v694, 0.0
    %v807 = vsel %vm762, %v695, 0.0
    %v808 = vsel %vm763, %v696, 0.0
    %v809 = vsel %vm763, %v697, 0.0
    %v810 = vsel %vm764, %v698, 0.0
    %v811 = vsel %vm764, %v699, 0.0
    %v812 = vsel %vm765, %v700, 0.0
    %v813 = vsel %vm765, %v701, 0.0
    %v814 = vsel %vm766, %v702, 0.0
    %v815 = vsel %vm766, %v703, 0.0
    %v816 = vsel %vm767, %v704, 0.0
    %v817 = vsel %vm767, %v705, 0.0
    %v818 = vsel %vm768, %v706, 0.0
    %v819 = vsel %vm768, %v707, 0.0
    %v820 = vsel %vm769, %v708, 0.0
    %v821 = vsel %vm769, %v709, 0.0
    %v822 = vsel %vm770, %v710, 0.0
    %v823 = vsel %vm770, %v711, 0.0
    %v824 = vsel %vm771, %v712, 0.0
    %v825 = vsel %vm771, %v713, 0.0
    %v826 = vsel %vm772, %v714, 0.0
    %v827 = vsel %vm772, %v715, 0.0
    %v828 = vsel %vm773, %v716, 0.0
    %v829 = vsel %vm773, %v717, 0.0
    %v830 = vld [vmem:[%s6] sm:$0x3]
    %v831 = vld [vmem:[%s7] sm:$0x3]
    %v832 = vadd.f32 %v774, %v776
    %v833 = vadd.f32 %v832, %v778
    %v834 = vadd.f32 %v833, %v780
    %v835 = vadd.f32 %v834, %v782
    %v836 = vadd.f32 %v835, %v784
    %v837 = vadd.f32 %v836, %v786
    %v838 = vadd.f32 %v837, %v788
    %v839 = vadd.f32 %v838, %v790
    %v840 = vadd.f32 %v839, %v792
    %v841 = vadd.f32 %v840, %v794
    %v842 = vadd.f32 %v841, %v796
    %v843 = vadd.f32 %v842, %v798
    %v844 = vadd.f32 %v843, %v800
    %v845 = vadd.f32 %v844, %v802
    %v846 = vadd.f32 %v845, %v804
    %v847 = vadd.f32 %v846, %v806
    %v848 = vadd.f32 %v847, %v808
    %v849 = vadd.f32 %v848, %v810
    %v850 = vadd.f32 %v849, %v812
    %v851 = vadd.f32 %v850, %v814
    %v852 = vadd.f32 %v851, %v816
    %v853 = vadd.f32 %v852, %v818
    %v854 = vadd.f32 %v853, %v820
    %v855 = vadd.f32 %v854, %v822
    %v856 = vadd.f32 %v855, %v824
    %v857 = vadd.f32 %v856, %v826
    %v858 = vadd.f32 %v857, %v828
    %v859 = vrot.slane %v858, 4
    %v860 = vadd.f32 %v858, %v859
    %v861 = vrot.slane %v860, 2
    %v862 = vadd.f32 %v860, %v861
    %v863 = vrot.slane %v862, 1
    %v864 = vadd.f32 %v862, %v863
    %v865 = vadd.f32 %v775, %v777
    %v866 = vadd.f32 %v865, %v779
    %v867 = vadd.f32 %v866, %v781
    %v868 = vadd.f32 %v867, %v783
    %v869 = vadd.f32 %v868, %v785
    %v870 = vadd.f32 %v869, %v787
    %v871 = vadd.f32 %v870, %v789
    %v872 = vadd.f32 %v871, %v791
    %v873 = vadd.f32 %v872, %v793
    %v874 = vadd.f32 %v873, %v795
    %v875 = vadd.f32 %v874, %v797
    %v876 = vadd.f32 %v875, %v799
    %v877 = vadd.f32 %v876, %v801
    %v878 = vadd.f32 %v877, %v803
    %v879 = vadd.f32 %v878, %v805
    %v880 = vadd.f32 %v879, %v807
    %v881 = vadd.f32 %v880, %v809
    %v882 = vadd.f32 %v881, %v811
    %v883 = vadd.f32 %v882, %v813
    %v884 = vadd.f32 %v883, %v815
    %v885 = vadd.f32 %v884, %v817
    %v886 = vadd.f32 %v885, %v819
    %v887 = vadd.f32 %v886, %v821
    %v888 = vadd.f32 %v887, %v823
    %v889 = vadd.f32 %v888, %v825
    %v890 = vadd.f32 %v889, %v827
    %v891 = vadd.f32 %v890, %v829
    %v892 = vrot.slane %v891, 4
    %v893 = vadd.f32 %v891, %v892
    %v894 = vrot.slane %v893, 2
    %v895 = vadd.f32 %v893, %v894
    %v896 = vrot.slane %v895, 1
    %v897 = vadd.f32 %v895, %v896
    %v898 = vmul.f32 %v774, %v774
    %v899 = vmul.f32 %v775, %v775
    %v900 = vmul.f32 %v776, %v776
    %v901 = vmul.f32 %v777, %v777
    %v902 = vmul.f32 %v778, %v778
    %v903 = vmul.f32 %v779, %v779
    %v904 = vmul.f32 %v780, %v780
    %v905 = vmul.f32 %v781, %v781
    %v906 = vmul.f32 %v782, %v782
    %v907 = vmul.f32 %v783, %v783
    %v908 = vmul.f32 %v784, %v784
    %v909 = vmul.f32 %v785, %v785
    %v910 = vmul.f32 %v786, %v786
    %v911 = vmul.f32 %v787, %v787
    %v912 = vmul.f32 %v788, %v788
    %v913 = vmul.f32 %v789, %v789
    %v914 = vmul.f32 %v790, %v790
    %v915 = vmul.f32 %v791, %v791
    %v916 = vmul.f32 %v792, %v792
    %v917 = vmul.f32 %v793, %v793
    %v918 = vmul.f32 %v794, %v794
    %v919 = vmul.f32 %v795, %v795
    %v920 = vmul.f32 %v796, %v796
    %v921 = vmul.f32 %v797, %v797
    %v922 = vmul.f32 %v798, %v798
    %v923 = vmul.f32 %v799, %v799
    %v924 = vmul.f32 %v800, %v800
    %v925 = vmul.f32 %v801, %v801
    %v926 = vmul.f32 %v802, %v802
    %v927 = vmul.f32 %v803, %v803
    %v928 = vmul.f32 %v804, %v804
    %v929 = vmul.f32 %v805, %v805
    %v930 = vmul.f32 %v806, %v806
    %v931 = vmul.f32 %v807, %v807
    %v932 = vmul.f32 %v808, %v808
    %v933 = vmul.f32 %v809, %v809
    %v934 = vmul.f32 %v810, %v810
    %v935 = vmul.f32 %v811, %v811
    %v936 = vmul.f32 %v812, %v812
    %v937 = vmul.f32 %v813, %v813
    %v938 = vmul.f32 %v814, %v814
    %v939 = vmul.f32 %v815, %v815
    %v940 = vmul.f32 %v816, %v816
    %v941 = vmul.f32 %v817, %v817
    %v942 = vmul.f32 %v818, %v818
    %v943 = vmul.f32 %v819, %v819
    %v944 = vmul.f32 %v820, %v820
    %v945 = vmul.f32 %v821, %v821
    %v946 = vmul.f32 %v822, %v822
    %v947 = vmul.f32 %v823, %v823
    %v948 = vmul.f32 %v824, %v824
    %v949 = vmul.f32 %v825, %v825
    %v950 = vmul.f32 %v826, %v826
    %v951 = vmul.f32 %v827, %v827
    %v952 = vmul.f32 %v828, %v828
    %v953 = vmul.f32 %v829, %v829
    %v954 = vadd.f32 %v898, %v900
    %v955 = vadd.f32 %v954, %v902
    %v956 = vadd.f32 %v955, %v904
    %v957 = vadd.f32 %v956, %v906
    %v958 = vadd.f32 %v957, %v908
    %v959 = vadd.f32 %v958, %v910
    %v960 = vadd.f32 %v959, %v912
    %v961 = vadd.f32 %v960, %v914
    %v962 = vadd.f32 %v961, %v916
    %v963 = vadd.f32 %v962, %v918
    %v964 = vadd.f32 %v963, %v920
    %v965 = vadd.f32 %v964, %v922
    %v966 = vadd.f32 %v965, %v924
    %v967 = vadd.f32 %v966, %v926
    %v968 = vadd.f32 %v967, %v928
    %v969 = vadd.f32 %v968, %v930
    %v970 = vadd.f32 %v969, %v932
    %v971 = vadd.f32 %v970, %v934
    %v972 = vadd.f32 %v971, %v936
    %v973 = vadd.f32 %v972, %v938
    %v974 = vadd.f32 %v973, %v940
    %v975 = vadd.f32 %v974, %v942
    %v976 = vadd.f32 %v975, %v944
    %v977 = vadd.f32 %v976, %v946
    %v978 = vadd.f32 %v977, %v948
    %v979 = vadd.f32 %v978, %v950
    %v980 = vadd.f32 %v979, %v952
    %v981 = vrot.slane %v980, 4
    %v982 = vadd.f32 %v980, %v981
    %v983 = vrot.slane %v982, 2
    %v984 = vadd.f32 %v982, %v983
    %v985 = vrot.slane %v984, 1
    %v986 = vadd.f32 %v984, %v985
    %v987 = vadd.f32 %v899, %v901
    %v988 = vadd.f32 %v987, %v903
    %v989 = vadd.f32 %v988, %v905
    %v990 = vadd.f32 %v989, %v907
    %v991 = vadd.f32 %v990, %v909
    %v992 = vadd.f32 %v991, %v911
    %v993 = vadd.f32 %v992, %v913
    %v994 = vadd.f32 %v993, %v915
    %v995 = vadd.f32 %v994, %v917
    %v996 = vadd.f32 %v995, %v919
    %v997 = vadd.f32 %v996, %v921
    %v998 = vadd.f32 %v997, %v923
    %v999 = vadd.f32 %v998, %v925
    %v1000 = vadd.f32 %v999, %v927
    %v1001 = vadd.f32 %v1000, %v929
    %v1002 = vadd.f32 %v1001, %v931
    %v1003 = vadd.f32 %v1002, %v933
    %v1004 = vadd.f32 %v1003, %v935
    %v1005 = vadd.f32 %v1004, %v937
    %v1006 = vadd.f32 %v1005, %v939
    %v1007 = vadd.f32 %v1006, %v941
    %v1008 = vadd.f32 %v1007, %v943
    %v1009 = vadd.f32 %v1008, %v945
    %v1010 = vadd.f32 %v1009, %v947
    %v1011 = vadd.f32 %v1010, %v949
    %v1012 = vadd.f32 %v1011, %v951
    %v1013 = vadd.f32 %v1012, %v953
    %v1014 = vrot.slane %v1013, 4
    %v1015 = vadd.f32 %v1013, %v1014
    %v1016 = vrot.slane %v1015, 2
    %v1017 = vadd.f32 %v1015, %v1016
    %v1018 = vrot.slane %v1017, 1
    %v1019 = vadd.f32 %v1017, %v1018
    %v1020 = vmul.f32 %v864, %v290
    %v1021 = vmul.f32 %v897, %v290
    %v1022 = vmul.f32 %v986, %v290
    %v1023 = vmul.f32 %v1019, %v290
    %v1024 = vmul.f32 %v1020, %v1020
    %v1025 = vmul.f32 %v1021, %v1021
    %v1026 = vsub.f32 %v1022, %v1024
    %v1027 = vsub.f32 %v1023, %v1025
    %v1028 = vmax.f32 %v1026, 0.0
    %v1029 = vmax.f32 %v1027, 0.0
    %v1030 = vadd.f32 %v1028, 1e-05
    %v1031 = vadd.f32 %v1029, 1e-05
    %v1032 = vrsqrt.pop %v1030
    %v1033 = vrsqrt.pop %v1031
    %v1035 = vlaneseq
    %v1036 = vshrl.u32 %v1035, 7
    %v1037 = vsub.s32 0, %v1036
    %v1038 = vrot.slane %v830, %v1037
    %v1039 = vlaneseq
    %v1040 = vshrl.u32 %v1039, 7
    %v1041 = vsub.s32 1, %v1040
    %v1042 = vrot.slane %v830, %v1041
    %v1045 = vmul.f32 %v1032, %v1038
    %v1046 = vmul.f32 %v1033, %v1042
    %v1047 = vmul.f32 %v1020, %v1045
    %v1048 = vmul.f32 %v1021, %v1046
    %v1051 = vcombine.low %v1047, %v1048
    %v1053 = vunpack.c.l.s4 1966171168
    %v1054 = vunpack.c.0.s8 %v1053
    %v1055 = vlaneseq
    %v1056 = vshrl.u32 %v1055, 7
    %v1057 = vsub.s32 %v1054, %v1056
    %v1058 = vrot.slane %v1051, %v1057
    %v1060 = vunpack.c.l.s4 1966171168
    %v1061 = vunpack.c.0.s8 %v1060
    %v1062 = vlaneseq
    %v1063 = vshrl.u32 %v1062, 7
    %v1064 = vsub.s32 %v1061, %v1063
    %v1065 = vrot.slane %v1058, %v1064
    %v1067 = vsub.f32 %v831, %v1065
    %v1068 = vlaneseq
    %v1069 = vshrl.u32 %v1068, 7
    %v1070 = vsub.s32 0, %v1069
    %v1071 = vrot.slane %v1045, %v1070
    %v1072 = vlaneseq
    %v1073 = vshrl.u32 %v1072, 7
    %v1074 = vsub.s32 0, %v1073
    %v1075 = vrot.slane %v1046, %v1074
    %v1076 = vmul.f32 %v774, %v1071
    %v1077 = vmul.f32 %v775, %v1075
    %v1078 = vmul.f32 %v776, %v1071
    %v1079 = vmul.f32 %v777, %v1075
    %v1080 = vmul.f32 %v778, %v1071
    %v1081 = vmul.f32 %v779, %v1075
    %v1082 = vmul.f32 %v780, %v1071
    %v1083 = vmul.f32 %v781, %v1075
    %v1084 = vmul.f32 %v782, %v1071
    %v1085 = vmul.f32 %v783, %v1075
    %v1086 = vmul.f32 %v784, %v1071
    %v1087 = vmul.f32 %v785, %v1075
    %v1088 = vmul.f32 %v786, %v1071
    %v1089 = vmul.f32 %v787, %v1075
    %v1090 = vmul.f32 %v788, %v1071
    %v1091 = vmul.f32 %v789, %v1075
    %v1092 = vmul.f32 %v790, %v1071
    %v1093 = vmul.f32 %v791, %v1075
    %v1094 = vmul.f32 %v792, %v1071
    %v1095 = vmul.f32 %v793, %v1075
    %v1096 = vmul.f32 %v794, %v1071
    %v1097 = vmul.f32 %v795, %v1075
    %v1098 = vmul.f32 %v796, %v1071
    %v1099 = vmul.f32 %v797, %v1075
    %v1100 = vmul.f32 %v798, %v1071
    %v1101 = vmul.f32 %v799, %v1075
    %v1102 = vmul.f32 %v800, %v1071
    %v1103 = vmul.f32 %v801, %v1075
    %v1104 = vmul.f32 %v802, %v1071
    %v1105 = vmul.f32 %v803, %v1075
    %v1106 = vmul.f32 %v804, %v1071
    %v1107 = vmul.f32 %v805, %v1075
    %v1108 = vmul.f32 %v806, %v1071
    %v1109 = vmul.f32 %v807, %v1075
    %v1110 = vmul.f32 %v808, %v1071
    %v1111 = vmul.f32 %v809, %v1075
    %v1112 = vmul.f32 %v810, %v1071
    %v1113 = vmul.f32 %v811, %v1075
    %v1114 = vmul.f32 %v812, %v1071
    %v1115 = vmul.f32 %v813, %v1075
    %v1116 = vmul.f32 %v814, %v1071
    %v1117 = vmul.f32 %v815, %v1075
    %v1118 = vmul.f32 %v816, %v1071
    %v1119 = vmul.f32 %v817, %v1075
    %v1120 = vmul.f32 %v818, %v1071
    %v1121 = vmul.f32 %v819, %v1075
    %v1122 = vmul.f32 %v820, %v1071
    %v1123 = vmul.f32 %v821, %v1075
    %v1124 = vmul.f32 %v822, %v1071
    %v1125 = vmul.f32 %v823, %v1075
    %v1126 = vmul.f32 %v824, %v1071
    %v1127 = vmul.f32 %v825, %v1075
    %v1128 = vmul.f32 %v826, %v1071
    %v1129 = vmul.f32 %v827, %v1075
    %v1130 = vmul.f32 %v828, %v1071
    %v1131 = vmul.f32 %v829, %v1075
    %v1133 = vlaneseq
    %v1134 = vshrl.u32 %v1133, 7
    %v1135 = vsub.s32 0, %v1134
    %v1136 = vrot.slane %v1067, %v1135
    %v1137 = vlaneseq
    %v1138 = vshrl.u32 %v1137, 7
    %v1139 = vsub.s32 1, %v1138
    %v1140 = vrot.slane %v1067, %v1139
    %v1143 = vadd.f32 %v1076, %v1136
    %v1144 = vadd.f32 %v1077, %v1140
    %v1145 = vadd.f32 %v1078, %v1136
    %v1146 = vadd.f32 %v1079, %v1140
    %v1147 = vadd.f32 %v1080, %v1136
    %v1148 = vadd.f32 %v1081, %v1140
    %v1149 = vadd.f32 %v1082, %v1136
    %v1150 = vadd.f32 %v1083, %v1140
    %v1151 = vadd.f32 %v1084, %v1136
    %v1152 = vadd.f32 %v1085, %v1140
    %v1153 = vadd.f32 %v1086, %v1136
    %v1154 = vadd.f32 %v1087, %v1140
    %v1155 = vadd.f32 %v1088, %v1136
    %v1156 = vadd.f32 %v1089, %v1140
    %v1157 = vadd.f32 %v1090, %v1136
    %v1158 = vadd.f32 %v1091, %v1140
    %v1159 = vadd.f32 %v1092, %v1136
    %v1160 = vadd.f32 %v1093, %v1140
    %v1161 = vadd.f32 %v1094, %v1136
    %v1162 = vadd.f32 %v1095, %v1140
    %v1163 = vadd.f32 %v1096, %v1136
    %v1164 = vadd.f32 %v1097, %v1140
    %v1165 = vadd.f32 %v1098, %v1136
    %v1166 = vadd.f32 %v1099, %v1140
    %v1167 = vadd.f32 %v1100, %v1136
    %v1168 = vadd.f32 %v1101, %v1140
    %v1169 = vadd.f32 %v1102, %v1136
    %v1170 = vadd.f32 %v1103, %v1140
    %v1171 = vadd.f32 %v1104, %v1136
    %v1172 = vadd.f32 %v1105, %v1140
    %v1173 = vadd.f32 %v1106, %v1136
    %v1174 = vadd.f32 %v1107, %v1140
    %v1175 = vadd.f32 %v1108, %v1136
    %v1176 = vadd.f32 %v1109, %v1140
    %v1177 = vadd.f32 %v1110, %v1136
    %v1178 = vadd.f32 %v1111, %v1140
    %v1179 = vadd.f32 %v1112, %v1136
    %v1180 = vadd.f32 %v1113, %v1140
    %v1181 = vadd.f32 %v1114, %v1136
    %v1182 = vadd.f32 %v1115, %v1140
    %v1183 = vadd.f32 %v1116, %v1136
    %v1184 = vadd.f32 %v1117, %v1140
    %v1185 = vadd.f32 %v1118, %v1136
    %v1186 = vadd.f32 %v1119, %v1140
    %v1187 = vadd.f32 %v1120, %v1136
    %v1188 = vadd.f32 %v1121, %v1140
    %v1189 = vadd.f32 %v1122, %v1136
    %v1190 = vadd.f32 %v1123, %v1140
    %v1191 = vadd.f32 %v1124, %v1136
    %v1192 = vadd.f32 %v1125, %v1140
    %v1193 = vadd.f32 %v1126, %v1136
    %v1194 = vadd.f32 %v1127, %v1140
    %v1195 = vadd.f32 %v1128, %v1136
    %v1196 = vadd.f32 %v1129, %v1140
    %v1197 = vadd.f32 %v1130, %v1136
    %v1198 = vadd.f32 %v1131, %v1140
    %v1199 = vpack.c.bf16 %v1145, %v1143
    %v1200 = vpack.c.bf16 %v1146, %v1144
    %v1201 = vpack.c.bf16 %v1149, %v1147
    %v1202 = vpack.c.bf16 %v1150, %v1148
    %v1203 = vpack.c.bf16 %v1153, %v1151
    %v1204 = vpack.c.bf16 %v1154, %v1152
    %v1205 = vpack.c.bf16 %v1157, %v1155
    %v1206 = vpack.c.bf16 %v1158, %v1156
    %v1207 = vpack.c.bf16 %v1161, %v1159
    %v1208 = vpack.c.bf16 %v1162, %v1160
    %v1209 = vpack.c.bf16 %v1165, %v1163
    %v1210 = vpack.c.bf16 %v1166, %v1164
    %v1211 = vpack.c.bf16 %v1169, %v1167
    %v1212 = vpack.c.bf16 %v1170, %v1168
    %v1213 = vpack.c.bf16 %v1173, %v1171
    %v1214 = vpack.c.bf16 %v1174, %v1172
    %v1215 = vpack.c.bf16 %v1177, %v1175
    %v1216 = vpack.c.bf16 %v1178, %v1176
    %v1217 = vpack.c.bf16 %v1181, %v1179
    %v1218 = vpack.c.bf16 %v1182, %v1180
    %v1219 = vpack.c.bf16 %v1185, %v1183
    %v1220 = vpack.c.bf16 %v1186, %v1184
    %v1221 = vpack.c.bf16 %v1189, %v1187
    %v1222 = vpack.c.bf16 %v1190, %v1188
    %v1223 = vpack.c.bf16 %v1193, %v1191
    %v1224 = vpack.c.bf16 %v1194, %v1192
    %v1225 = vpack.c.bf16 %v1197, %v1195
    %v1226 = vpack.c.bf16 %v1198, %v1196
    %v1227 = vld [vmem:[#allocation9] sm:$0xf]
    %v1228 = vld [vmem:[#allocation9 + $0x4] sm:$0xf]
    %v1229 = vld [vmem:[#allocation9 + $0x8] sm:$0xf]
    %v1230 = vld [vmem:[#allocation9 + $0xc] sm:$0xf]
    %v1231 = vld [vmem:[#allocation9 + $0x10] sm:$0xf]
    %v1232 = vld [vmem:[#allocation9 + $0x14] sm:$0xf]
    %v1233 = vld [vmem:[#allocation9 + $0x18] sm:$0xf]
    %v1234 = vld [vmem:[#allocation9 + $0x1c] sm:$0xf]
    %v1235 = vld [vmem:[#allocation9 + $0x20] sm:$0xf]
    %v1236 = vld [vmem:[#allocation9 + $0x24] sm:$0xf]
    %v1237 = vld [vmem:[#allocation9 + $0x28] sm:$0xf]
    %v1238 = vld [vmem:[#allocation9 + $0x2c] sm:$0xf]
    %v1239 = vld [vmem:[#allocation9 + $0x30] sm:$0xf]
    %v1240 = vld [vmem:[#allocation9 + $0x34] sm:$0xf]
    %v1241 = vld [vmem:[#allocation9 + $0x38] sm:$0xf]
    %v1242 = vld [vmem:[#allocation9 + $0x3c] sm:$0xf]
    %v1243 = vld [vmem:[#allocation9 + $0x40] sm:$0xf]
    %v1244 = vld [vmem:[#allocation9 + $0x44] sm:$0xf]
    %v1245 = vld [vmem:[#allocation9 + $0x48] sm:$0xf]
    %v1246 = vld [vmem:[#allocation9 + $0x4c] sm:$0xf]
    %v1247 = vld [vmem:[#allocation9 + $0x50] sm:$0xf]
    %v1248 = vld [vmem:[#allocation9 + $0x54] sm:$0xf]
    %v1249 = vld [vmem:[#allocation9 + $0x58] sm:$0xf]
    %v1250 = vld [vmem:[#allocation9 + $0x5c] sm:$0xf]
    %v1251 = vld [vmem:[#allocation9 + $0x60] sm:$0xf]
    %v1252 = vld [vmem:[#allocation9 + $0x64] sm:$0xf]
    %v1253 = vld [vmem:[#allocation9 + $0x68] sm:$0xf]
    %v1254 = vld [vmem:[#allocation9 + $0x6c] sm:$0xf]
    %v1255 = vld [vmem:[#allocation9 + $0x70] sm:$0xf]
    %v1256 = vld [vmem:[#allocation9 + $0x74] sm:$0xf]
    %v1257 = vld [vmem:[#allocation9 + $0x78] sm:$0xf]
    %v1258 = vld [vmem:[#allocation9 + $0x7c] sm:$0xf]
    %v1259 = vld [vmem:[%s9] sm:$0x1]
    %v1261 = vlaneseq
    %v1262 = vshrl.u32 %v1261, 7
    %v1263 = vsub.s32 0, %v1262
    %v1264 = vrot.slane %v1259, %v1263
    %v1298 = vunpack.c.l.b16 %v1227
    %v1299 = vunpack.c.l.b16 %v1228
    %v1300 = vunpack.c.l.b16 %v1229
    %v1301 = vunpack.c.l.b16 %v1230
    %v1302 = vunpack.c.l.b16 %v1231
    %v1303 = vunpack.c.l.b16 %v1232
    %v1304 = vunpack.c.l.b16 %v1233
    %v1305 = vunpack.c.l.b16 %v1234
    %v1306 = vunpack.c.l.b16 %v1235
    %v1307 = vunpack.c.l.b16 %v1236
    %v1308 = vunpack.c.l.b16 %v1237
    %v1309 = vunpack.c.l.b16 %v1238
    %v1310 = vunpack.c.l.b16 %v1239
    %v1311 = vunpack.c.l.b16 %v1240
    %v1312 = vunpack.c.l.b16 %v1241
    %v1313 = vunpack.c.l.b16 %v1242
    %v1314 = vunpack.c.l.b16 %v1243
    %v1315 = vunpack.c.l.b16 %v1244
    %v1316 = vunpack.c.l.b16 %v1245
    %v1317 = vunpack.c.l.b16 %v1246
    %v1318 = vunpack.c.l.b16 %v1247
    %v1319 = vunpack.c.l.b16 %v1248
    %v1320 = vunpack.c.l.b16 %v1249
    %v1321 = vunpack.c.l.b16 %v1250
    %v1322 = vunpack.c.l.b16 %v1251
    %v1323 = vunpack.c.l.b16 %v1252
    %v1324 = vunpack.c.l.b16 %v1253
    %v1325 = vunpack.c.l.b16 %v1254
    %v1326 = vunpack.c.l.b16 %v1255
    %v1327 = vunpack.c.l.b16 %v1256
    %v1328 = vunpack.c.l.b16 %v1257
    %v1329 = vunpack.c.l.b16 %v1258
    %v1330 = vpack.c.b16 %v1299, %v1298
    %v1331 = vpack.c.b16 %v1301, %v1300
    %v1332 = vpack.c.b16 %v1303, %v1302
    %v1333 = vpack.c.b16 %v1305, %v1304
    %v1334 = vpack.c.b16 %v1307, %v1306
    %v1335 = vpack.c.b16 %v1309, %v1308
    %v1336 = vpack.c.b16 %v1311, %v1310
    %v1337 = vpack.c.b16 %v1313, %v1312
    %v1338 = vpack.c.b16 %v1315, %v1314
    %v1339 = vpack.c.b16 %v1317, %v1316
    %v1340 = vpack.c.b16 %v1319, %v1318
    %v1341 = vpack.c.b16 %v1321, %v1320
    %v1342 = vpack.c.b16 %v1323, %v1322
    %v1343 = vpack.c.b16 %v1325, %v1324
    %v1344 = vpack.c.b16 %v1327, %v1326
    %v1345 = vpack.c.b16 %v1329, %v1328
    %1362 = vmatprep.subr.bf16.mxu0 0
    %1363 = vmatpush1.bf16.msra.mxu0 %v1330
    %1364 = vmatprep.subr.bf16.mxu0 0
    %1365 = vmatpush1.bf16.msra.mxu0 %v1331
    %1366 = vmatprep.subr.bf16.mxu0 0
    %1367 = vmatpush1.bf16.msra.mxu0 %v1332
    %1368 = vmatprep.subr.bf16.mxu0 0
    %1369 = vmatpush1.bf16.msra.mxu0 %v1333
    %1370 = vmatprep.subr.bf16.mxu0 0
    %1371 = vmatpush1.bf16.msra.mxu0 %v1334
    %1372 = vmatprep.subr.bf16.mxu0 0
    %1373 = vmatpush1.bf16.msra.mxu0 %v1335
    %1374 = vmatprep.subr.bf16.mxu0 0
    %1375 = vmatpush1.bf16.msra.mxu0 %v1336
    %1376 = vmatprep.subr.bf16.mxu0 0
    %1377 = vmatpush1.bf16.msra.mxu0 %v1337
    %1378 = vmatprep.subr.bf16.mxu0 0
    %1379 = vmatpush1.bf16.msra.mxu0 %v1338
    %1380 = vmatprep.subr.bf16.mxu0 0
    %1381 = vmatpush1.bf16.msra.mxu0 %v1339
    %1382 = vmatprep.subr.bf16.mxu0 0
    %1383 = vmatpush1.bf16.msra.mxu0 %v1340
    %1384 = vmatprep.subr.bf16.mxu0 0
    %1385 = vmatpush1.bf16.msra.mxu0 %v1341
    %1386 = vmatprep.subr.bf16.mxu0 0
    %1387 = vmatpush1.bf16.msra.mxu0 %v1342
    %1388 = vmatprep.subr.bf16.mxu0 0
    %1389 = vmatpush1.bf16.msra.mxu0 %v1343
    %1390 = vmatprep.subr.bf16.mxu0 0
    %1391 = vmatpush1.bf16.msra.mxu0 %v1344
    %1392 = vmatprep.subr.bf16.mxu0 0
    %1393 = vmatpush1.bf16.msra.mxu0 %v1345
    %1394 = vmatprep.mubr.bf16.mxu0 %v1200
    %1395 = vmatmul.mubr.bf16.gmra.mrb[0].mxu0 %v1199
    %v1396 = vpop.f32.mrb[0].mxu0
    %v1397 = vadd.f32 %v1264, %v1396
    %v1398 = vpop.f32.mrb[0].mxu0
    %v1399 = vpop.f32.mrb[0].mxu0
    %v1400 = vadd.f32 %v1264, %v1399
    %v1401 = vpop.f32.mrb[0].mxu0
    %1402 = vmatprep.mubr.bf16.mxu0 %v1202
    %1403 = vmatmul.mubr.bf16.gmra.mrb[0].mxu0 %v1201
    %v1404 = vpop.f32.mrb[0].mxu0
    %v1405 = vadd.f32 %v1264, %v1404
    %v1406 = vpop.f32.mrb[0].mxu0
    %v1407 = vpop.f32.mrb[0].mxu0
    %v1408 = vadd.f32 %v1264, %v1407
    %v1409 = vpop.f32.mrb[0].mxu0
    %1410 = vmatprep.mubr.bf16.mxu0 %v1204
    %1411 = vmatmul.mubr.bf16.gmra.mrb[0].mxu0 %v1203
    %v1412 = vpop.f32.mrb[0].mxu0
    %v1413 = vadd.f32 %v1264, %v1412
    %v1414 = vpop.f32.mrb[0].mxu0
    %v1415 = vpop.f32.mrb[0].mxu0
    %v1416 = vadd.f32 %v1264, %v1415
    %v1417 = vpop.f32.mrb[0].mxu0
    %1418 = vmatprep.mubr.bf16.mxu0 %v1206
    %1419 = vmatmul.mubr.bf16.gmra.mrb[0].mxu0 %v1205
    %v1420 = vpop.f32.mrb[0].mxu0
    %v1421 = vadd.f32 %v1264, %v1420
    %v1422 = vpop.f32.mrb[0].mxu0
    %v1423 = vpop.f32.mrb[0].mxu0
    %v1424 = vadd.f32 %v1264, %v1423
    %v1425 = vpop.f32.mrb[0].mxu0
    %1426 = vmatprep.mubr.bf16.mxu0 %v1208
    %1427 = vmatmul.mubr.bf16.gmra.mrb[0].mxu0 %v1207
    %v1428 = vpop.f32.mrb[0].mxu0
    %v1429 = vadd.f32 %v1264, %v1428
    %v1430 = vpop.f32.mrb[0].mxu0
    %v1431 = vpop.f32.mrb[0].mxu0
    %v1432 = vadd.f32 %v1264, %v1431
    %v1433 = vpop.f32.mrb[0].mxu0
    %1434 = vmatprep.mubr.bf16.mxu0 %v1210
    %1435 = vmatmul.mubr.bf16.gmra.mrb[0].mxu0 %v1209
    %v1436 = vpop.f32.mrb[0].mxu0
    %v1437 = vadd.f32 %v1264, %v1436
    %v1438 = vpop.f32.mrb[0].mxu0
    %v1439 = vpop.f32.mrb[0].mxu0
    %v1440 = vadd.f32 %v1264, %v1439
    %v1441 = vpop.f32.mrb[0].mxu0
    %1442 = vmatprep.mubr.bf16.mxu0 %v1212
    %1443 = vmatmul.mubr.bf16.gmra.mrb[0].mxu0 %v1211
    %v1444 = vpop.f32.mrb[0].mxu0
    %v1445 = vadd.f32 %v1264, %v1444
    %v1446 = vpop.f32.mrb[0].mxu0
    %v1447 = vpop.f32.mrb[0].mxu0
    %v1448 = vadd.f32 %v1264, %v1447
    %v1449 = vpop.f32.mrb[0].mxu0
    %1450 = vmatprep.mubr.bf16.mxu0 %v1214
    %1451 = vmatmul.mubr.bf16.gmra.mrb[0].mxu0 %v1213
    %v1452 = vpop.f32.mrb[0].mxu0
    %v1453 = vadd.f32 %v1264, %v1452
    %v1454 = vpop.f32.mrb[0].mxu0
    %v1455 = vpop.f32.mrb[0].mxu0
    %v1456 = vadd.f32 %v1264, %v1455
    %v1457 = vpop.f32.mrb[0].mxu0
    %1458 = vmatprep.mubr.bf16.mxu0 %v1216
    %1459 = vmatmul.mubr.bf16.gmra.mrb[0].mxu0 %v1215
    %v1460 = vpop.f32.mrb[0].mxu0
    %v1461 = vadd.f32 %v1264, %v1460
    %v1462 = vpop.f32.mrb[0].mxu0
    %v1463 = vpop.f32.mrb[0].mxu0
    %v1464 = vadd.f32 %v1264, %v1463
    %v1465 = vpop.f32.mrb[0].mxu0
    %1466 = vmatprep.mubr.bf16.mxu0 %v1218
    %1467 = vmatmul.mubr.bf16.gmra.mrb[0].mxu0 %v1217
    %v1468 = vpop.f32.mrb[0].mxu0
    %v1469 = vadd.f32 %v1264, %v1468
    %v1470 = vpop.f32.mrb[0].mxu0
    %v1471 = vpop.f32.mrb[0].mxu0
    %v1472 = vadd.f32 %v1264, %v1471
    %v1473 = vpop.f32.mrb[0].mxu0
    %1474 = vmatprep.mubr.bf16.mxu0 %v1220
    %1475 = vmatmul.mubr.bf16.gmra.mrb[0].mxu0 %v1219
    %v1476 = vpop.f32.mrb[0].mxu0
    %v1477 = vadd.f32 %v1264, %v1476
    %v1478 = vpop.f32.mrb[0].mxu0
    %v1479 = vpop.f32.mrb[0].mxu0
    %v1480 = vadd.f32 %v1264, %v1479
    %v1481 = vpop.f32.mrb[0].mxu0
    %1482 = vmatprep.mubr.bf16.mxu0 %v1222
    %1483 = vmatmul.mubr.bf16.gmra.mrb[0].mxu0 %v1221
    %v1484 = vpop.f32.mrb[0].mxu0
    %v1485 = vadd.f32 %v1264, %v1484
    %v1486 = vpop.f32.mrb[0].mxu0
    %v1487 = vpop.f32.mrb[0].mxu0
    %v1488 = vadd.f32 %v1264, %v1487
    %v1489 = vpop.f32.mrb[0].mxu0
    %1490 = vmatprep.mubr.bf16.mxu0 %v1224
    %1491 = vmatmul.mubr.bf16.gmra.mrb[0].mxu0 %v1223
    %v1492 = vpop.f32.mrb[0].mxu0
    %v1493 = vadd.f32 %v1264, %v1492
    %v1494 = vpop.f32.mrb[0].mxu0
    %v1495 = vpop.f32.mrb[0].mxu0
    %v1496 = vadd.f32 %v1264, %v1495
    %v1497 = vpop.f32.mrb[0].mxu0
    %1498 = vmatprep.mubr.bf16.mxu0 %v1226
    %1499 = vmatmul.mubr.bf16.gmra.mrb[0].mxu0 %v1225
    %v1500 = vpop.f32.mrb[0].mxu0
    %v1501 = vadd.f32 %v1264, %v1500
    %v1502 = vpop.f32.mrb[0].mxu0
    %v1503 = vpop.f32.mrb[0].mxu0
    %v1504 = vadd.f32 %v1264, %v1503
    %v1505 = vpop.f32.mrb[0].mxu0
    %1506 = vdwg.mxu0
    %v1507 = vmax.f32 %v1397, 0.0
    %v1508 = vmax.f32 %v1400, 0.0
    %v1509 = vmax.f32 %v1405, 0.0
    %v1510 = vmax.f32 %v1408, 0.0
    %v1511 = vmax.f32 %v1413, 0.0
    %v1512 = vmax.f32 %v1416, 0.0
    %v1513 = vmax.f32 %v1421, 0.0
    %v1514 = vmax.f32 %v1424, 0.0
    %v1515 = vmax.f32 %v1429, 0.0
    %v1516 = vmax.f32 %v1432, 0.0
    %v1517 = vmax.f32 %v1437, 0.0
    %v1518 = vmax.f32 %v1440, 0.0
    %v1519 = vmax.f32 %v1445, 0.0
    %v1520 = vmax.f32 %v1448, 0.0
    %v1521 = vmax.f32 %v1453, 0.0
    %v1522 = vmax.f32 %v1456, 0.0
    %v1523 = vmax.f32 %v1461, 0.0
    %v1524 = vmax.f32 %v1464, 0.0
    %v1525 = vmax.f32 %v1469, 0.0
    %v1526 = vmax.f32 %v1472, 0.0
    %v1527 = vmax.f32 %v1477, 0.0
    %v1528 = vmax.f32 %v1480, 0.0
    %v1529 = vmax.f32 %v1485, 0.0
    %v1530 = vmax.f32 %v1488, 0.0
    %v1531 = vmax.f32 %v1493, 0.0
    %v1532 = vmax.f32 %v1496, 0.0
    %v1533 = vmax.f32 %v1501, 0.0
    %v1534 = vmax.f32 %v1504, 0.0
    %v1535 = vsel %vm746, %v1507, 0.0
    %v1536 = vsel %vm747, %v1508, 0.0
    %v1537 = vsel %vm748, %v1509, 0.0
    %v1538 = vsel %vm749, %v1510, 0.0
    %v1539 = vsel %vm750, %v1511, 0.0
    %v1540 = vsel %vm751, %v1512, 0.0
    %v1541 = vsel %vm752, %v1513, 0.0
    %v1542 = vsel %vm753, %v1514, 0.0
    %v1543 = vsel %vm754, %v1515, 0.0
    %v1544 = vsel %vm755, %v1516, 0.0
    %v1545 = vsel %vm756, %v1517, 0.0
    %v1546 = vsel %vm757, %v1518, 0.0
    %v1547 = vsel %vm758, %v1519, 0.0
    %v1548 = vsel %vm759, %v1520, 0.0
    %v1549 = vsel %vm760, %v1521, 0.0
    %v1550 = vsel %vm761, %v1522, 0.0
    %v1551 = vsel %vm762, %v1523, 0.0
    %v1552 = vsel %vm763, %v1524, 0.0
    %v1553 = vsel %vm764, %v1525, 0.0
    %v1554 = vsel %vm765, %v1526, 0.0
    %v1555 = vsel %vm766, %v1527, 0.0
    %v1556 = vsel %vm767, %v1528, 0.0
    %v1557 = vsel %vm768, %v1529, 0.0
    %v1558 = vsel %vm769, %v1530, 0.0
    %v1559 = vsel %vm770, %v1531, 0.0
    %v1560 = vsel %vm771, %v1532, 0.0
    %v1561 = vsel %vm772, %v1533, 0.0
    %v1562 = vsel %vm773, %v1534, 0.0
    %v1563 = vld [vmem:[%s10] sm:$0x1]
    %v1564 = vld [vmem:[%s11] sm:$0x1]
    %v1565 = vadd.f32 %v1535, %v1536
    %v1566 = vadd.f32 %v1565, %v1537
    %v1567 = vadd.f32 %v1566, %v1538
    %v1568 = vadd.f32 %v1567, %v1539
    %v1569 = vadd.f32 %v1568, %v1540
    %v1570 = vadd.f32 %v1569, %v1541
    %v1571 = vadd.f32 %v1570, %v1542
    %v1572 = vadd.f32 %v1571, %v1543
    %v1573 = vadd.f32 %v1572, %v1544
    %v1574 = vadd.f32 %v1573, %v1545
    %v1575 = vadd.f32 %v1574, %v1546
    %v1576 = vadd.f32 %v1575, %v1547
    %v1577 = vadd.f32 %v1576, %v1548
    %v1578 = vadd.f32 %v1577, %v1549
    %v1579 = vadd.f32 %v1578, %v1550
    %v1580 = vadd.f32 %v1579, %v1551
    %v1581 = vadd.f32 %v1580, %v1552
    %v1582 = vadd.f32 %v1581, %v1553
    %v1583 = vadd.f32 %v1582, %v1554
    %v1584 = vadd.f32 %v1583, %v1555
    %v1585 = vadd.f32 %v1584, %v1556
    %v1586 = vadd.f32 %v1585, %v1557
    %v1587 = vadd.f32 %v1586, %v1558
    %v1588 = vadd.f32 %v1587, %v1559
    %v1589 = vadd.f32 %v1588, %v1560
    %v1590 = vadd.f32 %v1589, %v1561
    %v1591 = vadd.f32 %v1590, %v1562
    %v1592 = vrot.slane %v1591, 4
    %v1593 = vadd.f32 %v1591, %v1592
    %v1594 = vrot.slane %v1593, 2
    %v1595 = vadd.f32 %v1593, %v1594
    %v1596 = vrot.slane %v1595, 1
    %v1597 = vadd.f32 %v1595, %v1596
    %v1598 = vmul.f32 %v1535, %v1535
    %v1599 = vmul.f32 %v1536, %v1536
    %v1600 = vmul.f32 %v1537, %v1537
    %v1601 = vmul.f32 %v1538, %v1538
    %v1602 = vmul.f32 %v1539, %v1539
    %v1603 = vmul.f32 %v1540, %v1540
    %v1604 = vmul.f32 %v1541, %v1541
    %v1605 = vmul.f32 %v1542, %v1542
    %v1606 = vmul.f32 %v1543, %v1543
    %v1607 = vmul.f32 %v1544, %v1544
    %v1608 = vmul.f32 %v1545, %v1545
    %v1609 = vmul.f32 %v1546, %v1546
    %v1610 = vmul.f32 %v1547, %v1547
    %v1611 = vmul.f32 %v1548, %v1548
    %v1612 = vmul.f32 %v1549, %v1549
    %v1613 = vmul.f32 %v1550, %v1550
    %v1614 = vmul.f32 %v1551, %v1551
    %v1615 = vmul.f32 %v1552, %v1552
    %v1616 = vmul.f32 %v1553, %v1553
    %v1617 = vmul.f32 %v1554, %v1554
    %v1618 = vmul.f32 %v1555, %v1555
    %v1619 = vmul.f32 %v1556, %v1556
    %v1620 = vmul.f32 %v1557, %v1557
    %v1621 = vmul.f32 %v1558, %v1558
    %v1622 = vmul.f32 %v1559, %v1559
    %v1623 = vmul.f32 %v1560, %v1560
    %v1624 = vmul.f32 %v1561, %v1561
    %v1625 = vmul.f32 %v1562, %v1562
    %v1626 = vadd.f32 %v1598, %v1599
    %v1627 = vadd.f32 %v1626, %v1600
    %v1628 = vadd.f32 %v1627, %v1601
    %v1629 = vadd.f32 %v1628, %v1602
    %v1630 = vadd.f32 %v1629, %v1603
    %v1631 = vadd.f32 %v1630, %v1604
    %v1632 = vadd.f32 %v1631, %v1605
    %v1633 = vadd.f32 %v1632, %v1606
    %v1634 = vadd.f32 %v1633, %v1607
    %v1635 = vadd.f32 %v1634, %v1608
    %v1636 = vadd.f32 %v1635, %v1609
    %v1637 = vadd.f32 %v1636, %v1610
    %v1638 = vadd.f32 %v1637, %v1611
    %v1639 = vadd.f32 %v1638, %v1612
    %v1640 = vadd.f32 %v1639, %v1613
    %v1641 = vadd.f32 %v1640, %v1614
    %v1642 = vadd.f32 %v1641, %v1615
    %v1643 = vadd.f32 %v1642, %v1616
    %v1644 = vadd.f32 %v1643, %v1617
    %v1645 = vadd.f32 %v1644, %v1618
    %v1646 = vadd.f32 %v1645, %v1619
    %v1647 = vadd.f32 %v1646, %v1620
    %v1648 = vadd.f32 %v1647, %v1621
    %v1649 = vadd.f32 %v1648, %v1622
    %v1650 = vadd.f32 %v1649, %v1623
    %v1651 = vadd.f32 %v1650, %v1624
    %v1652 = vadd.f32 %v1651, %v1625
    %v1653 = vrot.slane %v1652, 4
    %v1654 = vadd.f32 %v1652, %v1653
    %v1655 = vrot.slane %v1654, 2
    %v1656 = vadd.f32 %v1654, %v1655
    %v1657 = vrot.slane %v1656, 1
    %v1658 = vadd.f32 %v1656, %v1657
    %v1659 = vmul.f32 %v1597, %v290
    %v1660 = vmul.f32 %v1658, %v290
    %v1661 = vmul.f32 %v1659, %v1659
    %v1662 = vsub.f32 %v1660, %v1661
    %v1663 = vmax.f32 %v1662, 0.0
    %v1664 = vadd.f32 %v1663, 1e-05
    %v1665 = vrsqrt.pop %v1664
    %v1666 = vmul.f32 %v1665, %v1563
    %v1667 = vmul.f32 %v1659, %v1666
    %v1668 = vsub.f32 %v1564, %v1667
    %v1669 = vlaneseq
    %v1670 = vshrl.u32 %v1669, 7
    %v1671 = vsub.s32 0, %v1670
    %v1672 = vrot.slane %v1666, %v1671
    %v1673 = vmul.f32 %v1535, %v1672
    %v1674 = vmul.f32 %v1536, %v1672
    %v1675 = vmul.f32 %v1537, %v1672
    %v1676 = vmul.f32 %v1538, %v1672
    %v1677 = vmul.f32 %v1539, %v1672
    %v1678 = vmul.f32 %v1540, %v1672
    %v1679 = vmul.f32 %v1541, %v1672
    %v1680 = vmul.f32 %v1542, %v1672
    %v1681 = vmul.f32 %v1543, %v1672
    %v1682 = vmul.f32 %v1544, %v1672
    %v1683 = vmul.f32 %v1545, %v1672
    %v1684 = vmul.f32 %v1546, %v1672
    %v1685 = vmul.f32 %v1547, %v1672
    %v1686 = vmul.f32 %v1548, %v1672
    %v1687 = vmul.f32 %v1549, %v1672
    %v1688 = vmul.f32 %v1550, %v1672
    %v1689 = vmul.f32 %v1551, %v1672
    %v1690 = vmul.f32 %v1552, %v1672
    %v1691 = vmul.f32 %v1553, %v1672
    %v1692 = vmul.f32 %v1554, %v1672
    %v1693 = vmul.f32 %v1555, %v1672
    %v1694 = vmul.f32 %v1556, %v1672
    %v1695 = vmul.f32 %v1557, %v1672
    %v1696 = vmul.f32 %v1558, %v1672
    %v1697 = vmul.f32 %v1559, %v1672
    %v1698 = vmul.f32 %v1560, %v1672
    %v1699 = vmul.f32 %v1561, %v1672
    %v1700 = vmul.f32 %v1562, %v1672
    %v1702 = vlaneseq
    %v1703 = vshrl.u32 %v1702, 7
    %v1704 = vsub.s32 0, %v1703
    %v1705 = vrot.slane %v1668, %v1704
    %v1707 = vadd.f32 %v1673, %v1705
    %v1708 = vadd.f32 %v1674, %v1705
    %v1709 = vadd.f32 %v1675, %v1705
    %v1710 = vadd.f32 %v1676, %v1705
    %v1711 = vadd.f32 %v1677, %v1705
    %v1712 = vadd.f32 %v1678, %v1705
    %v1713 = vadd.f32 %v1679, %v1705
    %v1714 = vadd.f32 %v1680, %v1705
    %v1715 = vadd.f32 %v1681, %v1705
    %v1716 = vadd.f32 %v1682, %v1705
    %v1717 = vadd.f32 %v1683, %v1705
    %v1718 = vadd.f32 %v1684, %v1705
    %v1719 = vadd.f32 %v1685, %v1705
    %v1720 = vadd.f32 %v1686, %v1705
    %v1721 = vadd.f32 %v1687, %v1705
    %v1722 = vadd.f32 %v1688, %v1705
    %v1723 = vadd.f32 %v1689, %v1705
    %v1724 = vadd.f32 %v1690, %v1705
    %v1725 = vadd.f32 %v1691, %v1705
    %v1726 = vadd.f32 %v1692, %v1705
    %v1727 = vadd.f32 %v1693, %v1705
    %v1728 = vadd.f32 %v1694, %v1705
    %v1729 = vadd.f32 %v1695, %v1705
    %v1730 = vadd.f32 %v1696, %v1705
    %v1731 = vadd.f32 %v1697, %v1705
    %v1732 = vadd.f32 %v1698, %v1705
    %v1733 = vadd.f32 %v1699, %v1705
    %v1734 = vadd.f32 %v1700, %v1705
    %v1735 = vpack.c.bf16 %v1708, %v1707
    %v1736 = vpack.c.bf16 %v1710, %v1709
    %v1737 = vpack.c.bf16 %v1712, %v1711
    %v1738 = vpack.c.bf16 %v1714, %v1713
    %v1739 = vpack.c.bf16 %v1716, %v1715
    %v1740 = vpack.c.bf16 %v1718, %v1717
    %v1741 = vpack.c.bf16 %v1720, %v1719
    %v1742 = vpack.c.bf16 %v1722, %v1721
    %v1743 = vpack.c.bf16 %v1724, %v1723
    %v1744 = vpack.c.bf16 %v1726, %v1725
    %v1745 = vpack.c.bf16 %v1728, %v1727
    %v1746 = vpack.c.bf16 %v1730, %v1729
    %v1747 = vpack.c.bf16 %v1732, %v1731
    %v1748 = vpack.c.bf16 %v1734, %v1733
    %v1749 = vld [vmem:[#allocation10] sm:$0xf]
    %v1750 = vld [vmem:[#allocation10 + $0x4] sm:$0xf]
    %v1751 = vld [vmem:[#allocation10 + $0x8] sm:$0xf]
    %v1752 = vld [vmem:[#allocation10 + $0xc] sm:$0xf]
    %v1753 = vld [vmem:[#allocation10 + $0x10] sm:$0xf]
    %v1754 = vld [vmem:[#allocation10 + $0x14] sm:$0xf]
    %v1755 = vld [vmem:[#allocation10 + $0x18] sm:$0xf]
    %v1756 = vld [vmem:[#allocation10 + $0x1c] sm:$0xf]
    %v1757 = vld [vmem:[#allocation10 + $0x20] sm:$0xf]
    %v1758 = vld [vmem:[#allocation10 + $0x24] sm:$0xf]
    %v1759 = vld [vmem:[#allocation10 + $0x28] sm:$0xf]
    %v1760 = vld [vmem:[#allocation10 + $0x2c] sm:$0xf]
    %v1761 = vld [vmem:[#allocation10 + $0x30] sm:$0xf]
    %v1762 = vld [vmem:[#allocation10 + $0x34] sm:$0xf]
    %v1763 = vld [vmem:[#allocation10 + $0x38] sm:$0xf]
    %v1764 = vld [vmem:[#allocation10 + $0x3c] sm:$0xf]
    %v1765 = vld [vmem:[%s13] sm:$0x1]
    %v1767 = vlaneseq
    %v1768 = vshrl.u32 %v1767, 7
    %v1769 = vsub.s32 0, %v1768
    %v1770 = vrot.slane %v1765, %v1769
    %v1788 = vunpack.c.l.b16 %v1749
    %v1789 = vunpack.c.l.b16 %v1750
    %v1790 = vunpack.c.l.b16 %v1751
    %v1791 = vunpack.c.l.b16 %v1752
    %v1792 = vunpack.c.l.b16 %v1753
    %v1793 = vunpack.c.l.b16 %v1754
    %v1794 = vunpack.c.l.b16 %v1755
    %v1795 = vunpack.c.l.b16 %v1756
    %v1796 = vunpack.c.l.b16 %v1757
    %v1797 = vunpack.c.l.b16 %v1758
    %v1798 = vunpack.c.l.b16 %v1759
    %v1799 = vunpack.c.l.b16 %v1760
    %v1800 = vunpack.c.l.b16 %v1761
    %v1801 = vunpack.c.l.b16 %v1762
    %v1802 = vunpack.c.l.b16 %v1763
    %v1803 = vunpack.c.l.b16 %v1764
    %v1804 = vpack.c.b16 %v1789, %v1788
    %v1805 = vpack.c.b16 %v1791, %v1790
    %v1806 = vpack.c.b16 %v1793, %v1792
    %v1807 = vpack.c.b16 %v1795, %v1794
    %v1808 = vpack.c.b16 %v1797, %v1796
    %v1809 = vpack.c.b16 %v1799, %v1798
    %v1810 = vpack.c.b16 %v1801, %v1800
    %v1811 = vpack.c.b16 %v1803, %v1802
    %1820 = vmatprep.subr.bf16.mxu0 0
    %1821 = vmatpush1.bf16.msra.mxu0 %v1804
    %1822 = vmatprep.subr.bf16.mxu0 0
    %1823 = vmatpush1.bf16.msra.mxu0 %v1805
    %1824 = vmatprep.subr.bf16.mxu0 0
    %1825 = vmatpush1.bf16.msra.mxu0 %v1806
    %1826 = vmatprep.subr.bf16.mxu0 0
    %1827 = vmatpush1.bf16.msra.mxu0 %v1807
    %1828 = vmatprep.subr.bf16.mxu0 0
    %1829 = vmatpush1.bf16.msra.mxu0 %v1808
    %1830 = vmatprep.subr.bf16.mxu0 0
    %1831 = vmatpush1.bf16.msra.mxu0 %v1809
    %1832 = vmatprep.subr.bf16.mxu0 0
    %1833 = vmatpush1.bf16.msra.mxu0 %v1810
    %1834 = vmatprep.subr.bf16.mxu0 0
    %1835 = vmatpush1.bf16.msra.mxu0 %v1811
    %1836 = vmatprep.subr.bf16.mxu0 0
    %1837 = vmatpush1.bf16.msra.mxu0 0
    %1838 = vmatprep.subr.bf16.mxu0 0
    %1839 = vmatpush1.bf16.msra.mxu0 0
    %1840 = vmatprep.subr.bf16.mxu0 0
    %1841 = vmatpush1.bf16.msra.mxu0 0
    %1842 = vmatprep.subr.bf16.mxu0 0
    %1843 = vmatpush1.bf16.msra.mxu0 0
    %1844 = vmatprep.subr.bf16.mxu0 0
    %1845 = vmatpush1.bf16.msra.mxu0 0
    %1846 = vmatprep.subr.bf16.mxu0 0
    %1847 = vmatpush1.bf16.msra.mxu0 0
    %1848 = vmatprep.subr.bf16.mxu0 0
    %1849 = vmatpush1.bf16.msra.mxu0 0
    %1850 = vmatprep.subr.bf16.mxu0 0
    %1851 = vmatpush1.bf16.msra.mxu0 0
    %1852 = vmatprep.mubr.bf16.mxu0 0
    %1853 = vmatmul.mubr.bf16.gmra.mrb[0].mxu0 %v1735
    %v1854 = vpop.f32.mrb[0].mxu0
    %v1855 = vadd.f32 %v1770, %v1854
    %v1856 = vpop.f32.mrb[0].mxu0
    %v1857 = vpop.f32.mrb[0].mxu0
    %v1858 = vadd.f32 %v1770, %v1857
    %v1859 = vpop.f32.mrb[0].mxu0
    %1860 = vmatprep.mubr.bf16.mxu0 0
    %1861 = vmatmul.mubr.bf16.gmra.mrb[0].mxu0 %v1736
    %v1862 = vpop.f32.mrb[0].mxu0
    %v1863 = vadd.f32 %v1770, %v1862
    %v1864 = vpop.f32.mrb[0].mxu0
    %v1865 = vpop.f32.mrb[0].mxu0
    %v1866 = vadd.f32 %v1770, %v1865
    %v1867 = vpop.f32.mrb[0].mxu0
    %1868 = vmatprep.mubr.bf16.mxu0 0
    %1869 = vmatmul.mubr.bf16.gmra.mrb[0].mxu0 %v1737
    %v1870 = vpop.f32.mrb[0].mxu0
    %v1871 = vadd.f32 %v1770, %v1870
    %v1872 = vpop.f32.mrb[0].mxu0
    %v1873 = vpop.f32.mrb[0].mxu0
    %v1874 = vadd.f32 %v1770, %v1873
    %v1875 = vpop.f32.mrb[0].mxu0
    %1876 = vmatprep.mubr.bf16.mxu0 0
    %1877 = vmatmul.mubr.bf16.gmra.mrb[0].mxu0 %v1738
    %v1878 = vpop.f32.mrb[0].mxu0
    %v1879 = vadd.f32 %v1770, %v1878
    %v1880 = vpop.f32.mrb[0].mxu0
    %v1881 = vpop.f32.mrb[0].mxu0
    %v1882 = vadd.f32 %v1770, %v1881
    %v1883 = vpop.f32.mrb[0].mxu0
    %1884 = vmatprep.mubr.bf16.mxu0 0
    %1885 = vmatmul.mubr.bf16.gmra.mrb[0].mxu0 %v1739
    %v1886 = vpop.f32.mrb[0].mxu0
    %v1887 = vadd.f32 %v1770, %v1886
    %v1888 = vpop.f32.mrb[0].mxu0
    %v1889 = vpop.f32.mrb[0].mxu0
    %v1890 = vadd.f32 %v1770, %v1889
    %v1891 = vpop.f32.mrb[0].mxu0
    %1892 = vmatprep.mubr.bf16.mxu0 0
    %1893 = vmatmul.mubr.bf16.gmra.mrb[0].mxu0 %v1740
    %v1894 = vpop.f32.mrb[0].mxu0
    %v1895 = vadd.f32 %v1770, %v1894
    %v1896 = vpop.f32.mrb[0].mxu0
    %v1897 = vpop.f32.mrb[0].mxu0
    %v1898 = vadd.f32 %v1770, %v1897
    %v1899 = vpop.f32.mrb[0].mxu0
    %1900 = vmatprep.mubr.bf16.mxu0 0
    %1901 = vmatmul.mubr.bf16.gmra.mrb[0].mxu0 %v1741
    %v1902 = vpop.f32.mrb[0].mxu0
    %v1903 = vadd.f32 %v1770, %v1902
    %v1904 = vpop.f32.mrb[0].mxu0
    %v1905 = vpop.f32.mrb[0].mxu0
    %v1906 = vadd.f32 %v1770, %v1905
    %v1907 = vpop.f32.mrb[0].mxu0
    %1908 = vmatprep.mubr.bf16.mxu0 0
    %1909 = vmatmul.mubr.bf16.gmra.mrb[0].mxu0 %v1742
    %v1910 = vpop.f32.mrb[0].mxu0
    %v1911 = vadd.f32 %v1770, %v1910
    %v1912 = vpop.f32.mrb[0].mxu0
    %v1913 = vpop.f32.mrb[0].mxu0
    %v1914 = vadd.f32 %v1770, %v1913
    %v1915 = vpop.f32.mrb[0].mxu0
    %1916 = vmatprep.mubr.bf16.mxu0 0
    %1917 = vmatmul.mubr.bf16.gmra.mrb[0].mxu0 %v1743
    %v1918 = vpop.f32.mrb[0].mxu0
    %v1919 = vadd.f32 %v1770, %v1918
    %v1920 = vpop.f32.mrb[0].mxu0
    %v1921 = vpop.f32.mrb[0].mxu0
    %v1922 = vadd.f32 %v1770, %v1921
    %v1923 = vpop.f32.mrb[0].mxu0
    %1924 = vmatprep.mubr.bf16.mxu0 0
    %1925 = vmatmul.mubr.bf16.gmra.mrb[0].mxu0 %v1744
    %v1926 = vpop.f32.mrb[0].mxu0
    %v1927 = vadd.f32 %v1770, %v1926
    %v1928 = vpop.f32.mrb[0].mxu0
    %v1929 = vpop.f32.mrb[0].mxu0
    %v1930 = vadd.f32 %v1770, %v1929
    %v1931 = vpop.f32.mrb[0].mxu0
    %1932 = vmatprep.mubr.bf16.mxu0 0
    %1933 = vmatmul.mubr.bf16.gmra.mrb[0].mxu0 %v1745
    %v1934 = vpop.f32.mrb[0].mxu0
    %v1935 = vadd.f32 %v1770, %v1934
    %v1936 = vpop.f32.mrb[0].mxu0
    %v1937 = vpop.f32.mrb[0].mxu0
    %v1938 = vadd.f32 %v1770, %v1937
    %v1939 = vpop.f32.mrb[0].mxu0
    %1940 = vmatprep.mubr.bf16.mxu0 0
    %1941 = vmatmul.mubr.bf16.gmra.mrb[0].mxu0 %v1746
    %v1942 = vpop.f32.mrb[0].mxu0
    %v1943 = vadd.f32 %v1770, %v1942
    %v1944 = vpop.f32.mrb[0].mxu0
    %v1945 = vpop.f32.mrb[0].mxu0
    %v1946 = vadd.f32 %v1770, %v1945
    %v1947 = vpop.f32.mrb[0].mxu0
    %1948 = vmatprep.mubr.bf16.mxu0 0
    %1949 = vmatmul.mubr.bf16.gmra.mrb[0].mxu0 %v1747
    %v1950 = vpop.f32.mrb[0].mxu0
    %v1951 = vadd.f32 %v1770, %v1950
    %v1952 = vpop.f32.mrb[0].mxu0
    %v1953 = vpop.f32.mrb[0].mxu0
    %v1954 = vadd.f32 %v1770, %v1953
    %v1955 = vpop.f32.mrb[0].mxu0
    %1956 = vmatprep.mubr.bf16.mxu0 0
    %1957 = vmatmul.mubr.bf16.gmra.mrb[0].mxu0 %v1748
    %v1958 = vpop.f32.mrb[0].mxu0
    %v1959 = vadd.f32 %v1770, %v1958
    %v1960 = vpop.f32.mrb[0].mxu0
    %v1961 = vpop.f32.mrb[0].mxu0
    %v1962 = vadd.f32 %v1770, %v1961
    %v1963 = vpop.f32.mrb[0].mxu0
    %1964 = vdwg.mxu0
    %v1965 = vmax.f32 %v1855, 0.0
    %v1966 = vmax.f32 %v1858, 0.0
    %v1967 = vmax.f32 %v1863, 0.0
    %v1968 = vmax.f32 %v1866, 0.0
    %v1969 = vmax.f32 %v1871, 0.0
    %v1970 = vmax.f32 %v1874, 0.0
    %v1971 = vmax.f32 %v1879, 0.0
    %v1972 = vmax.f32 %v1882, 0.0
    %v1973 = vmax.f32 %v1887, 0.0
    %v1974 = vmax.f32 %v1890, 0.0
    %v1975 = vmax.f32 %v1895, 0.0
    %v1976 = vmax.f32 %v1898, 0.0
    %v1977 = vmax.f32 %v1903, 0.0
    %v1978 = vmax.f32 %v1906, 0.0
    %v1979 = vmax.f32 %v1911, 0.0
    %v1980 = vmax.f32 %v1914, 0.0
    %v1981 = vmax.f32 %v1919, 0.0
    %v1982 = vmax.f32 %v1922, 0.0
    %v1983 = vmax.f32 %v1927, 0.0
    %v1984 = vmax.f32 %v1930, 0.0
    %v1985 = vmax.f32 %v1935, 0.0
    %v1986 = vmax.f32 %v1938, 0.0
    %v1987 = vmax.f32 %v1943, 0.0
    %v1988 = vmax.f32 %v1946, 0.0
    %v1989 = vmax.f32 %v1951, 0.0
    %v1990 = vmax.f32 %v1954, 0.0
    %v1991 = vmax.f32 %v1959, 0.0
    %v1992 = vmax.f32 %v1962, 0.0
    %v1993 = vsel %vm746, %v1965, 0.0
    %v1994 = vsel %vm747, %v1966, 0.0
    %v1995 = vsel %vm748, %v1967, 0.0
    %v1996 = vsel %vm749, %v1968, 0.0
    %v1997 = vsel %vm750, %v1969, 0.0
    %v1998 = vsel %vm751, %v1970, 0.0
    %v1999 = vsel %vm752, %v1971, 0.0
    %v2000 = vsel %vm753, %v1972, 0.0
    %v2001 = vsel %vm754, %v1973, 0.0
    %v2002 = vsel %vm755, %v1974, 0.0
    %v2003 = vsel %vm756, %v1975, 0.0
    %v2004 = vsel %vm757, %v1976, 0.0
    %v2005 = vsel %vm758, %v1977, 0.0
    %v2006 = vsel %vm759, %v1978, 0.0
    %v2007 = vsel %vm760, %v1979, 0.0
    %v2008 = vsel %vm761, %v1980, 0.0
    %v2009 = vsel %vm762, %v1981, 0.0
    %v2010 = vsel %vm763, %v1982, 0.0
    %v2011 = vsel %vm764, %v1983, 0.0
    %v2012 = vsel %vm765, %v1984, 0.0
    %v2013 = vsel %vm766, %v1985, 0.0
    %v2014 = vsel %vm767, %v1986, 0.0
    %v2015 = vsel %vm768, %v1987, 0.0
    %v2016 = vsel %vm769, %v1988, 0.0
    %v2017 = vsel %vm770, %v1989, 0.0
    %v2018 = vsel %vm771, %v1990, 0.0
    %v2019 = vsel %vm772, %v1991, 0.0
    %v2020 = vsel %vm773, %v1992, 0.0
    %2021 = vst [vmem:[#allocation12] sm:$0xff] %v1993
    %2022 = vst [vmem:[#allocation12 + $0x8] sm:$0xff] %v1994
    %2023 = vst [vmem:[#allocation12 + $0x10] sm:$0xff] %v1995
    %2024 = vst [vmem:[#allocation12 + $0x18] sm:$0xff] %v1996
    %2025 = vst [vmem:[#allocation12 + $0x20] sm:$0xff] %v1997
    %2026 = vst [vmem:[#allocation12 + $0x28] sm:$0xff] %v1998
    %2027 = vst [vmem:[#allocation12 + $0x30] sm:$0xff] %v1999
    %2028 = vst [vmem:[#allocation12 + $0x38] sm:$0xff] %v2000
    %2029 = vst [vmem:[#allocation12 + $0x40] sm:$0xff] %v2001
    %2030 = vst [vmem:[#allocation12 + $0x48] sm:$0xff] %v2002
    %2031 = vst [vmem:[#allocation12 + $0x50] sm:$0xff] %v2003
    %2032 = vst [vmem:[#allocation12 + $0x58] sm:$0xff] %v2004
    %2033 = vst [vmem:[#allocation12 + $0x60] sm:$0xff] %v2005
    %2034 = vst [vmem:[#allocation12 + $0x68] sm:$0xff] %v2006
    %2035 = vst [vmem:[#allocation12 + $0x70] sm:$0xff] %v2007
    %2036 = vst [vmem:[#allocation12 + $0x78] sm:$0xff] %v2008
    %2037 = vst [vmem:[#allocation12 + $0x80] sm:$0xff] %v2009
    %2038 = vst [vmem:[#allocation12 + $0x88] sm:$0xff] %v2010
    %2039 = vst [vmem:[#allocation12 + $0x90] sm:$0xff] %v2011
    %2040 = vst [vmem:[#allocation12 + $0x98] sm:$0xff] %v2012
    %2041 = vst [vmem:[#allocation12 + $0xa0] sm:$0xff] %v2013
    %2042 = vst [vmem:[#allocation12 + $0xa8] sm:$0xff] %v2014
    %2043 = vst [vmem:[#allocation12 + $0xb0] sm:$0xff] %v2015
    %2044 = vst [vmem:[#allocation12 + $0xb8] sm:$0xff] %v2016
    %2045 = vst [vmem:[#allocation12 + $0xc0] sm:$0xff] %v2017
    %2046 = vst [vmem:[#allocation12 + $0xc8] sm:$0xff] %v2018
    %2047 = vst [vmem:[#allocation12 + $0xd0] sm:$0xff] %v2019
    %2048 = vst [vmem:[#allocation12 + $0xd8] sm:$0xff] %v2020
    // Predicated region
    $region70: #{tpu_custom_call.1} parent=1 // pred_check
      _
    $region71: #{tpu_custom_call.1} parent=1 // pred_check_branch
      %2050 = sbr.rel (0) target = $region73
    $region72: #{tpu_custom_call.1} parent=1 // pred_region
      %s2052 = ssub.s32 3584, 3584
      %2053 = vsyncadd [#allocation6], %s2052
      %s2054 = sshll.u32 [#allocation12], 4
      %s2055 = int_to_ptr.vmem [resolvable:$true] %s2054
      %2060 = dma.vmem_to_hbm [thread:$0]  %s2055, 3584, %s14, [#allocation6], 128, 128, 8
    $region73: #{tpu_custom_call.1} parent=1 // pred_fallthru
      _
    // Predicated region
    $region74: #{tpu_custom_call.1} parent=1 // pred_check
      _
    $region75: #{tpu_custom_call.1} parent=1 // pred_check_branch
      %2062 = sbr.rel (0) target = $region77
    $region76: #{tpu_custom_call.1} parent=1 // pred_region
      %2063 = dma.done [#allocation6], 3584
    $region77: #{tpu_custom_call.1} parent=1 // pred_fallthru
      _
    %2064 = vsyncpa [#allocation5], 1
    %2065 = vsyncpa [#allocation8], 1
    %2066 = vsyncpa [#allocation11], 1
    %2067 = vsyncpa [#allocation6], 1

</llo_original>
